<compile_context>
chip_gen: v7x
topology: tpu7x:2x2x1
jax: 0.10.0
libtpu: 0.0.40
codegen_flags: <defaults>
</compile_context>

<pallas_src>
import functools

import numpy as np
import jax
import jax.numpy as jnp
from jax import lax
from jax.experimental import pallas as pl
from jax.experimental.pallas import tpu as pltpu


def _round_up(x, m):
    return (x + m - 1) // m * m


def _pad_gates_lastdim(w, H, Hp):
    """(..., 4H) -> (..., 4Hp): zero-pad each of the 4 gate blocks to Hp lanes."""
    lead = w.shape[:-1]
    w4 = w.reshape(lead + (4, H))
    w4 = jnp.pad(w4, [(0, 0)] * len(lead) + [(0, 0), (0, Hp - H)])
    return w4.reshape(lead + (4 * Hp,))


# -----------------------------------------------------------------------------
# Kernel
# -----------------------------------------------------------------------------
def seq_classifier_kernel(x_ref, wih_f_ref, whh_f_ref, bf_ref,
                          wih_b_ref, bb_ref, wfc_ref, bfc_ref,
                          out_ref, gx_ref, *, gate_dtype):
    T, Bt, E = x_ref.shape
    Hp = whh_f_ref.shape[0]                     # padded hidden (multiple of 128)

    x = x_ref[...]                              # (T, Bt, E)   bf16, time-major
    whh_f = whh_f_ref[...]                      # (Hp, 4Hp)    bf16 (resident across loop)
    w_fc = wfc_ref[...]                         # (2Hp, Cp)    bf16
    b_fc = bfc_ref[...]                         # (1, Cp)      f32

    def split_gates(g):                         # lane-aligned 128-wide slices
        i = jax.nn.sigmoid(g[:, 0 * Hp:1 * Hp])
        f = jax.nn.sigmoid(g[:, 1 * Hp:2 * Hp])
        gg = jnp.tanh(g[:, 2 * Hp:3 * Hp])
        o = jax.nn.sigmoid(g[:, 3 * Hp:4 * Hp])
        return i, f, gg, o

    # --- Backward direction at t = T-1: one cell step from zero state (h0 = c0 = 0,
    # so the W_hh term vanishes exactly). Issued first so its MXU push hides under
    # the forward recurrence.
    gb = (jnp.dot(x[T - 1], wih_b_ref[...], preferred_element_type=jnp.float32)
          + bb_ref[...]).astype(gate_dtype)
    i_b, _, g_b, o_b = split_gates(gb)
    h_bwd = o_b.astype(jnp.float32) * jnp.tanh((i_b * g_b).astype(jnp.float32))  # (Bt, Hp)

    # --- Forward direction: hoist the input projection (one batched matmul, bias folded
    # in once) into a bf16 VMEM scratch; the serial path is only h @ W_hh + gate math.
    gx = jnp.dot(x.reshape(T * Bt, E), wih_f_ref[...],
                 preferred_element_type=jnp.float32) + bf_ref[...]
    gx_ref[...] = gx.reshape(T, Bt, 4 * Hp).astype(gx_ref.dtype)

    # t = 0: h = c = 0, so skip the recurrent matmul entirely (exact).
    i0, _, g0, o0 = split_gates(gx_ref[0].astype(gate_dtype))
    c = (i0 * g0).astype(jnp.float32)
    h = o0.astype(jnp.float32) * jnp.tanh(c)

    # t = 1..T-1: bounded-live-range recurrence (carry is just h, c in f32).
    def step(t, carry):
        h, c = carry
        gates = (gx_ref[t].astype(jnp.float32)
                 + jnp.dot(h.astype(jnp.bfloat16), whh_f,
                           preferred_element_type=jnp.float32))
        i, f, g, o = split_gates(gates.astype(gate_dtype))
        c = f.astype(jnp.float32) * c + (i * g).astype(jnp.float32)
        h = o.astype(jnp.float32) * jnp.tanh(c)
        return h, c

    if T > 1:
        h, c = lax.fori_loop(1, T, step, (h, c), unroll=min(T - 1, 8))

    # --- fc(concat([h_fwd, h_bwd], -1)) as a single fused (Bt, 2Hp) @ (2Hp, Cp) push.
    h_cat = jnp.concatenate(
        [h.astype(jnp.bfloat16), h_bwd.astype(jnp.bfloat16)], axis=-1)
    y = jnp.dot(h_cat, w_fc, preferred_element_type=jnp.float32) + b_fc
    out_ref[...] = y.astype(out_ref.dtype)      # lane-dense (Bt, Cp) store


# -----------------------------------------------------------------------------
# Wrapper: embedding gather (glue), layout padding, grid over batch.
# -----------------------------------------------------------------------------
@functools.partial(jax.jit, static_argnames=("b_tile",))
def seq_classifier_forward(batch_ids, params, b_tile=64):
    H = params["w_hh_f"].shape[0]
    C = params["b_fc"].shape[-1]
    E = params["embeddings"].shape[1]
    Hp = _round_up(H, 128)                      # lane-aligned hidden
    Cp = _round_up(C, 128)                      # lane-dense logits

    B, T = batch_ids.shape

    # Embedding lookup is glue (plain XLA gather), but it emits the kernel layout
    # directly: bf16 table + transposed ids -> (T, B, E) bf16, no extra HBM passes.
    emb_bf16 = params["embeddings"].astype(jnp.bfloat16)
    x = jnp.take(emb_bf16, batch_ids.T, axis=0)                 # (T, B, E) bf16

    # Batch tiling: 16-aligned (bf16 sublane packing), aim for >= 2 tiles so the
    # "parallel" grid axis feeds both v7x TensorCores, cap at b_tile (default 64
    # keeps the per-step gate tensor well under the 64-vreg file).
    b_tile = max(16, _round_up(b_tile, 16))
    B16 = _round_up(B, 16)
    bt = min(b_tile, _round_up(pl.cdiv(B16, 2), 16))
    Bp = _round_up(B16, bt)
    x = jnp.pad(x, ((0, 0), (0, Bp - B), (0, 0)))               # (T, Bp, E)

    # Pad weights so gate blocks / hidden lanes / logit lanes are 128-aligned.
    # Padded hidden lanes provably stay exactly 0 through the recurrence (zero
    # weights + zero bias => i=f=o=0.5, g=0, c stays 0, h stays 0).
    bf16 = jnp.bfloat16
    wih_f = _pad_gates_lastdim(params["w_ih_f"], H, Hp).astype(bf16)          # (E, 4Hp)
    whh_f = jnp.pad(_pad_gates_lastdim(params["w_hh_f"], H, Hp),
                    ((0, Hp - H), (0, 0))).astype(bf16)                       # (Hp, 4Hp)
    b_f = _pad_gates_lastdim(params["b_f"], H, Hp)                            # (1, 4Hp) f32
    wih_b = _pad_gates_lastdim(params["w_ih_b"], H, Hp).astype(bf16)          # (E, 4Hp)
    b_b = _pad_gates_lastdim(params["b_b"], H, Hp)                            # (1, 4Hp) f32
    w_fc = jnp.concatenate(
        [jnp.pad(params["w_fc_f"], ((0, Hp - H), (0, Cp - C))),
         jnp.pad(params["w_fc_b"], ((0, Hp - H), (0, Cp - C)))],
        axis=0).astype(bf16)                                                  # (2Hp, Cp)
    b_fc = jnp.pad(params["b_fc"], ((0, 0), (0, Cp - C)))                     # (1, Cp) f32

    # bf16 gate nonlinearities where the EUP supports them (v6e/v7x); f32 on v5e/older.
    try:
        kind = jax.devices()[0].device_kind.lower()
    except Exception:  # pragma: no cover
        kind = ""
    old_gen = any(s in kind for s in ("v2", "v3", "v4", "v5"))
    gate_dtype = jnp.float32 if old_gen else jnp.bfloat16

    # Scoped-VMEM budget from the actual blocks (inputs/outputs double-buffered by
    # default, gx scratch single), plus 2x headroom for in-kernel temporaries.
    w_bytes = (2 * (E * 4 * Hp) + Hp * 4 * Hp + 2 * Hp * Cp) * 2 \
              + (2 * 4 * Hp + Cp) * 4
    x_bytes = T * bt * E * 2
    out_bytes = bt * Cp * 4
    gx_bytes = T * bt * 4 * Hp * 2
    vmem_limit = int(min(max(2 * (2 * (w_bytes + x_bytes + out_bytes) + gx_bytes),
                             32 * 1024 * 1024),
                         64 * 1024 * 1024))

    resident = lambda i: (0, 0)                 # weights stay in VMEM across the grid
    # NOTE(perf): at real model sizes, mark the resident weight specs below with
    # pipeline_mode=pl.Buffered(1) to drop their second DMA buffer, and consider
    # stationary-RHS MXU driving (matmul_push_rhs) for whh_f on v5e.
    kernel = functools.partial(seq_classifier_kernel, gate_dtype=gate_dtype)
    out = pl.pallas_call(
        kernel,
        out_shape=jax.ShapeDtypeStruct((Bp, Cp), jnp.float32),
        grid_spec=pltpu.PrefetchScalarGridSpec(
            num_scalar_prefetch=0,
            grid=(Bp // bt,),
            in_specs=[
                pl.BlockSpec((T, bt, E), lambda i: (0, i, 0)),   # x: tiled on batch
                pl.BlockSpec((E, 4 * Hp), resident),
                pl.BlockSpec((Hp, 4 * Hp), resident),
                pl.BlockSpec((1, 4 * Hp), resident),
                pl.BlockSpec((E, 4 * Hp), resident),
                pl.BlockSpec((1, 4 * Hp), resident),
                pl.BlockSpec((2 * Hp, Cp), resident),
                pl.BlockSpec((1, Cp), resident),
            ],
            out_specs=pl.BlockSpec((bt, Cp), lambda i: (i, 0)),
            scratch_shapes=[pltpu.VMEM((T, bt, 4 * Hp), jnp.bfloat16)],  # gx scratch
        ),
        compiler_params=pltpu.CompilerParams(
            dimension_semantics=("parallel",),   # megacore sharding on v7x; no-op v5e/v6e
            vmem_limit_bytes=vmem_limit),
    )(x, wih_f, whh_f, b_f, wih_b, b_b, w_fc, b_fc)

    return out[:B, :C]


# -----------------------------------------------------------------------------
# Params + pure-JAX f32 reference (identical semantics, for validation)
# -----------------------------------------------------------------------------
def init_params(key, vocab, embed_dim, hidden, num_class):
    ks = jax.random.split(key, 10)
    u = lambda k, shape: jax.random.uniform(k, shape, jnp.float32, -0.1, 0.1)
    return {
        "embeddings": u(ks[0], (vocab, embed_dim)),
        # PyTorch stores weight_ih as (4H, E) / weight_hh as (4H, H); we keep transposes.
        "w_ih_f": u(ks[1], (embed_dim, 4 * hidden)),
        "w_hh_f": u(ks[2], (hidden, 4 * hidden)),
        "b_f":    u(ks[3], (1, 4 * hidden)),          # = b_ih + b_hh (combined)
        "w_ih_b": u(ks[4], (embed_dim, 4 * hidden)),
        "w_hh_b": u(ks[5], (hidden, 4 * hidden)),     # unused at zero state (exactly no effect)
        "b_b":    u(ks[6], (1, 4 * hidden)),
        # fc: Linear(2H, C); split its weight into forward/backward halves (transposed).
        "w_fc_f": u(ks[7], (hidden, num_class)),
        "w_fc_b": u(ks[8], (hidden, num_class)),
        "b_fc":   u(ks[9], (1, num_class)),
    }


def _lstm_cell_ref(xt, h, c, w_ih, w_hh, b, H):
    gates = xt @ w_ih + h @ w_hh + b
    i = jax.nn.sigmoid(gates[:, 0 * H:1 * H])
    f = jax.nn.sigmoid(gates[:, 1 * H:2 * H])
    g = jnp.tanh(gates[:, 2 * H:3 * H])
    o = jax.nn.sigmoid(gates[:, 3 * H:4 * H])
    c_new = f * c + i * g
    return o * jnp.tanh(c_new), c_new


def reference_forward(batch_ids, params):
    x = jnp.take(params["embeddings"], batch_ids, axis=0)
    B, T, _ = x.shape
    H = params["w_hh_f"].shape[0]
    h = jnp.zeros((B, H), jnp.float32)
    c = jnp.zeros((B, H), jnp.float32)
    for t in range(T):
        h, c = _lstm_cell_ref(x[:, t, :], h, c,
                              params["w_ih_f"], params["w_hh_f"], params["b_f"], H)
    z = jnp.zeros((B, H), jnp.float32)
    h_bwd, _ = _lstm_cell_ref(x[:, T - 1, :], z, z,
                              params["w_ih_b"], params["w_hh_b"], params["b_b"], H)
    return h @ params["w_fc_f"] + h_bwd @ params["w_fc_b"] + params["b_fc"]


if __name__ == "__main__":
    B, T = 2, 8
    VOCAB, EMBED, HIDDEN, NUM_CLASS = 50, 32, 32, 10

    key = jax.random.PRNGKey(0)
    k_param, k_ids = jax.random.split(key)
    params = init_params(k_param, VOCAB, EMBED, HIDDEN, NUM_CLASS)
    batch_ids = jax.random.randint(k_ids, (B, T), 0, VOCAB, dtype=jnp.int32)

    logits = jax.block_until_ready(seq_classifier_forward(batch_ids, params))
    ref = jax.block_until_ready(reference_forward(batch_ids, params))

    # bf16 weights/activations/gates with f32 accumulation -> loosened tolerance.
    np.testing.assert_allclose(np.asarray(logits), np.asarray(ref), rtol=2e-2, atol=2e-2)
    assert logits.shape == (B, NUM_CLASS)

    # TODO(synk): self.dropout is declared in __init__ but never applied in forward -> no-op.
    print("KERNEL_OK")
</pallas_src>

<mosaic_0001>
module attributes {stable_mosaic.version = 11 : i64} {
  func.func @seq_classifier_kernel(%arg0: i32, %arg1: memref<8x16x32xbf16, #tpu.memory_space<vmem>>, %arg2: memref<32x512xbf16, #tpu.memory_space<vmem>>, %arg3: memref<128x512xbf16, #tpu.memory_space<vmem>>, %arg4: memref<1x512xf32, #tpu.memory_space<vmem>>, %arg5: memref<32x512xbf16, #tpu.memory_space<vmem>>, %arg6: memref<1x512xf32, #tpu.memory_space<vmem>>, %arg7: memref<256x128xbf16, #tpu.memory_space<vmem>>, %arg8: memref<1x128xf32, #tpu.memory_space<vmem>>, %arg9: memref<16x128xf32, #tpu.memory_space<vmem>>, %arg10: memref<8x16x512xbf16, #tpu.memory_space<vmem>>) attributes {dimension_semantics = [#tpu.dimension_semantics<parallel>], iteration_bounds = array<i64: 1>, scalar_prefetch = 0 : i64, scratch_operands = 1 : i64, tpu.core_type = #tpu.core_type<tc>, window_params = [{transform_indices = @transform_0, window_bounds = array<i64: 8, 16, 32>}, {pipeline_mode = #tpu.pipeline_mode<synchronous>, transform_indices = @transform_1, window_bounds = array<i64: 32, 512>}, {pipeline_mode = #tpu.pipeline_mode<synchronous>, transform_indices = @transform_2, window_bounds = array<i64: 128, 512>}, {pipeline_mode = #tpu.pipeline_mode<synchronous>, transform_indices = @transform_3, window_bounds = array<i64: 1, 512>}, {pipeline_mode = #tpu.pipeline_mode<synchronous>, transform_indices = @transform_4, window_bounds = array<i64: 32, 512>}, {pipeline_mode = #tpu.pipeline_mode<synchronous>, transform_indices = @transform_5, window_bounds = array<i64: 1, 512>}, {pipeline_mode = #tpu.pipeline_mode<synchronous>, transform_indices = @transform_6, window_bounds = array<i64: 256, 128>}, {pipeline_mode = #tpu.pipeline_mode<synchronous>, transform_indices = @transform_7, window_bounds = array<i64: 1, 128>}, {transform_indices = @transform_8, window_bounds = array<i64: 16, 128>}]} {
    %c0 = arith.constant 0 : index
    %c0_0 = arith.constant 0 : index
    %c0_1 = arith.constant 0 : index
    %0 = vector.load %arg1[%c0, %c0_0, %c0_1] : memref<8x16x32xbf16, #tpu.memory_space<vmem>>, vector<8x16x32xbf16>
    %c0_2 = arith.constant 0 : index
    %c0_3 = arith.constant 0 : index
    %1 = vector.load %arg3[%c0_2, %c0_3] : memref<128x512xbf16, #tpu.memory_space<vmem>>, vector<128x512xbf16>
    %c0_4 = arith.constant 0 : index
    %c0_5 = arith.constant 0 : index
    %2 = vector.load %arg7[%c0_4, %c0_5] : memref<256x128xbf16, #tpu.memory_space<vmem>>, vector<256x128xbf16>
    %c0_6 = arith.constant 0 : index
    %c0_7 = arith.constant 0 : index
    %3 = vector.load %arg8[%c0_6, %c0_7] : memref<1x128xf32, #tpu.memory_space<vmem>>, vector<1x128xf32>
    %4 = vector.extract_strided_slice %0 {offsets = [7, 0, 0], sizes = [1, 16, 32], strides = [1, 1, 1]} : vector<8x16x32xbf16> to vector<1x16x32xbf16>
    %5 = vector.shape_cast %4 : vector<1x16x32xbf16> to vector<16x32xbf16>
    %c0_8 = arith.constant 0 : index
    %c0_9 = arith.constant 0 : index
    %6 = vector.load %arg5[%c0_8, %c0_9] : memref<32x512xbf16, #tpu.memory_space<vmem>>, vector<32x512xbf16>
    %cst = arith.constant dense<0.000000e+00> : vector<16x512xf32>
    %7 = tpu.matmul %5, %6, %cst {dimension_numbers = #tpu.dot_dimension_numbers<[1], [0], [0], [1], [0, 0, 1, 1], [], []>} : vector<16x32xbf16>, vector<32x512xbf16>, vector<16x512xf32> -> vector<16x512xf32>
    %c0_10 = arith.constant 0 : index
    %c0_11 = arith.constant 0 : index
    %8 = vector.load %arg6[%c0_10, %c0_11] : memref<1x512xf32, #tpu.memory_space<vmem>>, vector<1x512xf32>
    %9 = vector.broadcast %8 : vector<1x512xf32> to vector<16x512xf32>
    %10 = arith.addf %7, %9 : vector<16x512xf32>
    %11 = arith.truncf %10 : vector<16x512xf32> to vector<16x512xbf16>
    %12 = vector.extract_strided_slice %11 {offsets = [0, 0], sizes = [16, 128], strides = [1, 1]} : vector<16x512xbf16> to vector<16x128xbf16>
    %13 = arith.negf %12 : vector<16x128xbf16>
    %14 = math.exp %13 : vector<16x128xbf16>
    %cst_12 = arith.constant 1.000000e+00 : bf16
    %15 = vector.broadcast %cst_12 : bf16 to vector<16x128xbf16>
    %16 = arith.addf %15, %14 : vector<16x128xbf16>
    %17 = arith.divf %15, %16 : vector<16x128xbf16>
    %18 = vector.extract_strided_slice %11 {offsets = [0, 256], sizes = [16, 128], strides = [1, 1]} : vector<16x512xbf16> to vector<16x128xbf16>
    %19 = math.tanh %18 : vector<16x128xbf16>
    %20 = vector.extract_strided_slice %11 {offsets = [0, 384], sizes = [16, 128], strides = [1, 1]} : vector<16x512xbf16> to vector<16x128xbf16>
    %21 = arith.negf %20 : vector<16x128xbf16>
    %22 = math.exp %21 : vector<16x128xbf16>
    %cst_13 = arith.constant 1.000000e+00 : bf16
    %23 = vector.broadcast %cst_13 : bf16 to vector<16x128xbf16>
    %24 = arith.addf %23, %22 : vector<16x128xbf16>
    %25 = arith.divf %23, %24 : vector<16x128xbf16>
    %26 = arith.extf %25 : vector<16x128xbf16> to vector<16x128xf32>
    %27 = arith.mulf %17, %19 : vector<16x128xbf16>
    %28 = arith.extf %27 : vector<16x128xbf16> to vector<16x128xf32>
    %29 = math.tanh %28 : vector<16x128xf32>
    %30 = arith.mulf %26, %29 : vector<16x128xf32>
    %31 = vector.shape_cast %0 : vector<8x16x32xbf16> to vector<128x32xbf16>
    %c0_14 = arith.constant 0 : index
    %c0_15 = arith.constant 0 : index
    %32 = vector.load %arg2[%c0_14, %c0_15] : memref<32x512xbf16, #tpu.memory_space<vmem>>, vector<32x512xbf16>
    %cst_16 = arith.constant dense<0.000000e+00> : vector<128x512xf32>
    %33 = tpu.matmul %31, %32, %cst_16 {dimension_numbers = #tpu.dot_dimension_numbers<[1], [0], [0], [1], [0, 0, 1, 1], [], []>} : vector<128x32xbf16>, vector<32x512xbf16>, vector<128x512xf32> -> vector<128x512xf32>
    %c0_17 = arith.constant 0 : index
    %c0_18 = arith.constant 0 : index
    %34 = vector.load %arg4[%c0_17, %c0_18] : memref<1x512xf32, #tpu.memory_space<vmem>>, vector<1x512xf32>
    %35 = vector.broadcast %34 : vector<1x512xf32> to vector<128x512xf32>
    %36 = arith.addf %33, %35 : vector<128x512xf32>
    %37 = vector.shape_cast %36 : vector<128x512xf32> to vector<8x16x512xf32>
    %38 = arith.truncf %37 : vector<8x16x512xf32> to vector<8x16x512xbf16>
    %c0_19 = arith.constant 0 : index
    %c0_20 = arith.constant 0 : index
    %c0_21 = arith.constant 0 : index
    %39 = vector.load %arg10[%c0_19, %c0_20, %c0_21] : memref<8x16x512xbf16, #tpu.memory_space<vmem>>, vector<8x16x512xbf16>
    tpu.vector_store %arg10[%c0_19, %c0_20, %c0_21], %38 {strides = array<i32>} : memref<8x16x512xbf16, #tpu.memory_space<vmem>>, vector<8x16x512xbf16>,
    %c0_22 = arith.constant 0 : index
    %c0_23 = arith.constant 0 : index
    %c0_24 = arith.constant 0 : index
    %40 = vector.load %arg10[%c0_22, %c0_23, %c0_24] : memref<8x16x512xbf16, #tpu.memory_space<vmem>>, vector<1x16x512xbf16>
    %41 = vector.shape_cast %40 : vector<1x16x512xbf16> to vector<16x512xbf16>
    %42 = vector.extract_strided_slice %41 {offsets = [0, 0], sizes = [16, 128], strides = [1, 1]} : vector<16x512xbf16> to vector<16x128xbf16>
    %43 = arith.negf %42 : vector<16x128xbf16>
    %44 = math.exp %43 : vector<16x128xbf16>
    %cst_25 = arith.constant 1.000000e+00 : bf16
    %45 = vector.broadcast %cst_25 : bf16 to vector<16x128xbf16>
    %46 = arith.addf %45, %44 : vector<16x128xbf16>
    %47 = arith.divf %45, %46 : vector<16x128xbf16>
    %48 = vector.extract_strided_slice %41 {offsets = [0, 256], sizes = [16, 128], strides = [1, 1]} : vector<16x512xbf16> to vector<16x128xbf16>
    %49 = math.tanh %48 : vector<16x128xbf16>
    %50 = vector.extract_strided_slice %41 {offsets = [0, 384], sizes = [16, 128], strides = [1, 1]} : vector<16x512xbf16> to vector<16x128xbf16>
    %51 = arith.negf %50 : vector<16x128xbf16>
    %52 = math.exp %51 : vector<16x128xbf16>
    %cst_26 = arith.constant 1.000000e+00 : bf16
    %53 = vector.broadcast %cst_26 : bf16 to vector<16x128xbf16>
    %54 = arith.addf %53, %52 : vector<16x128xbf16>
    %55 = arith.divf %53, %54 : vector<16x128xbf16>
    %56 = arith.mulf %47, %49 : vector<16x128xbf16>
    %57 = arith.extf %56 : vector<16x128xbf16> to vector<16x128xf32>
    %58 = arith.extf %55 : vector<16x128xbf16> to vector<16x128xf32>
    %59 = math.tanh %57 : vector<16x128xf32>
    %60 = arith.mulf %58, %59 : vector<16x128xf32>
    %c1_i32 = arith.constant 1 : i32
    %61 = arith.index_cast %c1_i32 : i32 to index
    %c0_27 = arith.constant 0 : index
    %c0_28 = arith.constant 0 : index
    %62 = vector.load %arg10[%61, %c0_27, %c0_28] : memref<8x16x512xbf16, #tpu.memory_space<vmem>>, vector<1x16x512xbf16>
    %63 = vector.shape_cast %62 : vector<1x16x512xbf16> to vector<16x512xbf16>
    %64 = arith.extf %63 : vector<16x512xbf16> to vector<16x512xf32>
    %65 = arith.truncf %60 : vector<16x128xf32> to vector<16x128xbf16>
    %cst_29 = arith.constant dense<0.000000e+00> : vector<16x512xf32>
    %66 = tpu.matmul %65, %1, %cst_29 {dimension_numbers = #tpu.dot_dimension_numbers<[1], [0], [0], [1], [0, 0, 1, 1], [], []>} : vector<16x128xbf16>, vector<128x512xbf16>, vector<16x512xf32> -> vector<16x512xf32>
    %67 = arith.addf %64, %66 : vector<16x512xf32>
    %68 = arith.truncf %67 : vector<16x512xf32> to vector<16x512xbf16>
    %69 = vector.extract_strided_slice %68 {offsets = [0, 0], sizes = [16, 128], strides = [1, 1]} : vector<16x512xbf16> to vector<16x128xbf16>
    %70 = arith.negf %69 : vector<16x128xbf16>
    %71 = math.exp %70 : vector<16x128xbf16>
    %cst_30 = arith.constant 1.000000e+00 : bf16
    %72 = vector.broadcast %cst_30 : bf16 to vector<16x128xbf16>
    %73 = arith.addf %72, %71 : vector<16x128xbf16>
    %74 = arith.divf %72, %73 : vector<16x128xbf16>
    %75 = vector.extract_strided_slice %68 {offsets = [0, 128], sizes = [16, 128], strides = [1, 1]} : vector<16x512xbf16> to vector<16x128xbf16>
    %76 = arith.negf %75 : vector<16x128xbf16>
    %77 = math.exp %76 : vector<16x128xbf16>
    %cst_31 = arith.constant 1.000000e+00 : bf16
    %78 = vector.broadcast %cst_31 : bf16 to vector<16x128xbf16>
    %79 = arith.addf %78, %77 : vector<16x128xbf16>
    %80 = arith.divf %78, %79 : vector<16x128xbf16>
    %81 = vector.extract_strided_slice %68 {offsets = [0, 256], sizes = [16, 128], strides = [1, 1]} : vector<16x512xbf16> to vector<16x128xbf16>
    %82 = math.tanh %81 : vector<16x128xbf16>
    %83 = vector.extract_strided_slice %68 {offsets = [0, 384], sizes = [16, 128], strides = [1, 1]} : vector<16x512xbf16> to vector<16x128xbf16>
    %84 = arith.negf %83 : vector<16x128xbf16>
    %85 = math.exp %84 : vector<16x128xbf16>
    %cst_32 = arith.constant 1.000000e+00 : bf16
    %86 = vector.broadcast %cst_32 : bf16 to vector<16x128xbf16>
    %87 = arith.addf %86, %85 : vector<16x128xbf16>
    %88 = arith.divf %86, %87 : vector<16x128xbf16>
    %89 = arith.extf %80 : vector<16x128xbf16> to vector<16x128xf32>
    %90 = arith.mulf %89, %57 : vector<16x128xf32>
    %91 = arith.mulf %74, %82 : vector<16x128xbf16>
    %92 = arith.extf %91 : vector<16x128xbf16> to vector<16x128xf32>
    %93 = arith.addf %90, %92 : vector<16x128xf32>
    %94 = arith.extf %88 : vector<16x128xbf16> to vector<16x128xf32>
    %95 = math.tanh %93 : vector<16x128xf32>
    %96 = arith.mulf %94, %95 : vector<16x128xf32>
    %c2_i32 = arith.constant 2 : i32
    %97 = arith.index_cast %c2_i32 : i32 to index
    %c0_33 = arith.constant 0 : index
    %c0_34 = arith.constant 0 : index
    %98 = vector.load %arg10[%97, %c0_33, %c0_34] : memref<8x16x512xbf16, #tpu.memory_space<vmem>>, vector<1x16x512xbf16>
    %99 = vector.shape_cast %98 : vector<1x16x512xbf16> to vector<16x512xbf16>
    %100 = arith.extf %99 : vector<16x512xbf16> to vector<16x512xf32>
    %101 = arith.truncf %96 : vector<16x128xf32> to vector<16x128xbf16>
    %cst_35 = arith.constant dense<0.000000e+00> : vector<16x512xf32>
    %102 = tpu.matmul %101, %1, %cst_35 {dimension_numbers = #tpu.dot_dimension_numbers<[1], [0], [0], [1], [0, 0, 1, 1], [], []>} : vector<16x128xbf16>, vector<128x512xbf16>, vector<16x512xf32> -> vector<16x512xf32>
    %103 = arith.addf %100, %102 : vector<16x512xf32>
    %104 = arith.truncf %103 : vector<16x512xf32> to vector<16x512xbf16>
    %105 = vector.extract_strided_slice %104 {offsets = [0, 0], sizes = [16, 128], strides = [1, 1]} : vector<16x512xbf16> to vector<16x128xbf16>
    %106 = arith.negf %105 : vector<16x128xbf16>
    %107 = math.exp %106 : vector<16x128xbf16>
    %cst_36 = arith.constant 1.000000e+00 : bf16
    %108 = vector.broadcast %cst_36 : bf16 to vector<16x128xbf16>
    %109 = arith.addf %108, %107 : vector<16x128xbf16>
    %110 = arith.divf %108, %109 : vector<16x128xbf16>
    %111 = vector.extract_strided_slice %104 {offsets = [0, 128], sizes = [16, 128], strides = [1, 1]} : vector<16x512xbf16> to vector<16x128xbf16>
    %112 = arith.negf %111 : vector<16x128xbf16>
    %113 = math.exp %112 : vector<16x128xbf16>
    %cst_37 = arith.constant 1.000000e+00 : bf16
    %114 = vector.broadcast %cst_37 : bf16 to vector<16x128xbf16>
    %115 = arith.addf %114, %113 : vector<16x128xbf16>
    %116 = arith.divf %114, %115 : vector<16x128xbf16>
    %117 = vector.extract_strided_slice %104 {offsets = [0, 256], sizes = [16, 128], strides = [1, 1]} : vector<16x512xbf16> to vector<16x128xbf16>
    %118 = math.tanh %117 : vector<16x128xbf16>
    %119 = vector.extract_strided_slice %104 {offsets = [0, 384], sizes = [16, 128], strides = [1, 1]} : vector<16x512xbf16> to vector<16x128xbf16>
    %120 = arith.negf %119 : vector<16x128xbf16>
    %121 = math.exp %120 : vector<16x128xbf16>
    %cst_38 = arith.constant 1.000000e+00 : bf16
    %122 = vector.broadcast %cst_38 : bf16 to vector<16x128xbf16>
    %123 = arith.addf %122, %121 : vector<16x128xbf16>
    %124 = arith.divf %122, %123 : vector<16x128xbf16>
    %125 = arith.extf %116 : vector<16x128xbf16> to vector<16x128xf32>
    %126 = arith.mulf %125, %93 : vector<16x128xf32>
    %127 = arith.mulf %110, %118 : vector<16x128xbf16>
    %128 = arith.extf %127 : vector<16x128xbf16> to vector<16x128xf32>
    %129 = arith.addf %126, %128 : vector<16x128xf32>
    %130 = arith.extf %124 : vector<16x128xbf16> to vector<16x128xf32>
    %131 = math.tanh %129 : vector<16x128xf32>
    %132 = arith.mulf %130, %131 : vector<16x128xf32>
    %c3_i32 = arith.constant 3 : i32
    %133 = arith.index_cast %c3_i32 : i32 to index
    %c0_39 = arith.constant 0 : index
    %c0_40 = arith.constant 0 : index
    %134 = vector.load %arg10[%133, %c0_39, %c0_40] : memref<8x16x512xbf16, #tpu.memory_space<vmem>>, vector<1x16x512xbf16>
    %135 = vector.shape_cast %134 : vector<1x16x512xbf16> to vector<16x512xbf16>
    %136 = arith.extf %135 : vector<16x512xbf16> to vector<16x512xf32>
    %137 = arith.truncf %132 : vector<16x128xf32> to vector<16x128xbf16>
    %cst_41 = arith.constant dense<0.000000e+00> : vector<16x512xf32>
    %138 = tpu.matmul %137, %1, %cst_41 {dimension_numbers = #tpu.dot_dimension_numbers<[1], [0], [0], [1], [0, 0, 1, 1], [], []>} : vector<16x128xbf16>, vector<128x512xbf16>, vector<16x512xf32> -> vector<16x512xf32>
    %139 = arith.addf %136, %138 : vector<16x512xf32>
    %140 = arith.truncf %139 : vector<16x512xf32> to vector<16x512xbf16>
    %141 = vector.extract_strided_slice %140 {offsets = [0, 0], sizes = [16, 128], strides = [1, 1]} : vector<16x512xbf16> to vector<16x128xbf16>
    %142 = arith.negf %141 : vector<16x128xbf16>
    %143 = math.exp %142 : vector<16x128xbf16>
    %cst_42 = arith.constant 1.000000e+00 : bf16
    %144 = vector.broadcast %cst_42 : bf16 to vector<16x128xbf16>
    %145 = arith.addf %144, %143 : vector<16x128xbf16>
    %146 = arith.divf %144, %145 : vector<16x128xbf16>
    %147 = vector.extract_strided_slice %140 {offsets = [0, 128], sizes = [16, 128], strides = [1, 1]} : vector<16x512xbf16> to vector<16x128xbf16>
    %148 = arith.negf %147 : vector<16x128xbf16>
    %149 = math.exp %148 : vector<16x128xbf16>
    %cst_43 = arith.constant 1.000000e+00 : bf16
    %150 = vector.broadcast %cst_43 : bf16 to vector<16x128xbf16>
    %151 = arith.addf %150, %149 : vector<16x128xbf16>
    %152 = arith.divf %150, %151 : vector<16x128xbf16>
    %153 = vector.extract_strided_slice %140 {offsets = [0, 256], sizes = [16, 128], strides = [1, 1]} : vector<16x512xbf16> to vector<16x128xbf16>
    %154 = math.tanh %153 : vector<16x128xbf16>
    %155 = vector.extract_strided_slice %140 {offsets = [0, 384], sizes = [16, 128], strides = [1, 1]} : vector<16x512xbf16> to vector<16x128xbf16>
    %156 = arith.negf %155 : vector<16x128xbf16>
    %157 = math.exp %156 : vector<16x128xbf16>
    %cst_44 = arith.constant 1.000000e+00 : bf16
    %158 = vector.broadcast %cst_44 : bf16 to vector<16x128xbf16>
    %159 = arith.addf %158, %157 : vector<16x128xbf16>
    %160 = arith.divf %158, %159 : vector<16x128xbf16>
    %161 = arith.extf %152 : vector<16x128xbf16> to vector<16x128xf32>
    %162 = arith.mulf %161, %129 : vector<16x128xf32>
    %163 = arith.mulf %146, %154 : vector<16x128xbf16>
    %164 = arith.extf %163 : vector<16x128xbf16> to vector<16x128xf32>
    %165 = arith.addf %162, %164 : vector<16x128xf32>
    %166 = arith.extf %160 : vector<16x128xbf16> to vector<16x128xf32>
    %167 = math.tanh %165 : vector<16x128xf32>
    %168 = arith.mulf %166, %167 : vector<16x128xf32>
    %c4_i32 = arith.constant 4 : i32
    %169 = arith.index_cast %c4_i32 : i32 to index
    %c0_45 = arith.constant 0 : index
    %c0_46 = arith.constant 0 : index
    %170 = vector.load %arg10[%169, %c0_45, %c0_46] : memref<8x16x512xbf16, #tpu.memory_space<vmem>>, vector<1x16x512xbf16>
    %171 = vector.shape_cast %170 : vector<1x16x512xbf16> to vector<16x512xbf16>
    %172 = arith.extf %171 : vector<16x512xbf16> to vector<16x512xf32>
    %173 = arith.truncf %168 : vector<16x128xf32> to vector<16x128xbf16>
    %cst_47 = arith.constant dense<0.000000e+00> : vector<16x512xf32>
    %174 = tpu.matmul %173, %1, %cst_47 {dimension_numbers = #tpu.dot_dimension_numbers<[1], [0], [0], [1], [0, 0, 1, 1], [], []>} : vector<16x128xbf16>, vector<128x512xbf16>, vector<16x512xf32> -> vector<16x512xf32>
    %175 = arith.addf %172, %174 : vector<16x512xf32>
    %176 = arith.truncf %175 : vector<16x512xf32> to vector<16x512xbf16>
    %177 = vector.extract_strided_slice %176 {offsets = [0, 0], sizes = [16, 128], strides = [1, 1]} : vector<16x512xbf16> to vector<16x128xbf16>
    %178 = arith.negf %177 : vector<16x128xbf16>
    %179 = math.exp %178 : vector<16x128xbf16>
    %cst_48 = arith.constant 1.000000e+00 : bf16
    %180 = vector.broadcast %cst_48 : bf16 to vector<16x128xbf16>
    %181 = arith.addf %180, %179 : vector<16x128xbf16>
    %182 = arith.divf %180, %181 : vector<16x128xbf16>
    %183 = vector.extract_strided_slice %176 {offsets = [0, 128], sizes = [16, 128], strides = [1, 1]} : vector<16x512xbf16> to vector<16x128xbf16>
    %184 = arith.negf %183 : vector<16x128xbf16>
    %185 = math.exp %184 : vector<16x128xbf16>
    %cst_49 = arith.constant 1.000000e+00 : bf16
    %186 = vector.broadcast %cst_49 : bf16 to vector<16x128xbf16>
    %187 = arith.addf %186, %185 : vector<16x128xbf16>
    %188 = arith.divf %186, %187 : vector<16x128xbf16>
    %189 = vector.extract_strided_slice %176 {offsets = [0, 256], sizes = [16, 128], strides = [1, 1]} : vector<16x512xbf16> to vector<16x128xbf16>
    %190 = math.tanh %189 : vector<16x128xbf16>
    %191 = vector.extract_strided_slice %176 {offsets = [0, 384], sizes = [16, 128], strides = [1, 1]} : vector<16x512xbf16> to vector<16x128xbf16>
    %192 = arith.negf %191 : vector<16x128xbf16>
    %193 = math.exp %192 : vector<16x128xbf16>
    %cst_50 = arith.constant 1.000000e+00 : bf16
    %194 = vector.broadcast %cst_50 : bf16 to vector<16x128xbf16>
    %195 = arith.addf %194, %193 : vector<16x128xbf16>
    %196 = arith.divf %194, %195 : vector<16x128xbf16>
    %197 = arith.extf %188 : vector<16x128xbf16> to vector<16x128xf32>
    %198 = arith.mulf %197, %165 : vector<16x128xf32>
    %199 = arith.mulf %182, %190 : vector<16x128xbf16>
    %200 = arith.extf %199 : vector<16x128xbf16> to vector<16x128xf32>
    %201 = arith.addf %198, %200 : vector<16x128xf32>
    %202 = arith.extf %196 : vector<16x128xbf16> to vector<16x128xf32>
    %203 = math.tanh %201 : vector<16x128xf32>
    %204 = arith.mulf %202, %203 : vector<16x128xf32>
    %c5_i32 = arith.constant 5 : i32
    %205 = arith.index_cast %c5_i32 : i32 to index
    %c0_51 = arith.constant 0 : index
    %c0_52 = arith.constant 0 : index
    %206 = vector.load %arg10[%205, %c0_51, %c0_52] : memref<8x16x512xbf16, #tpu.memory_space<vmem>>, vector<1x16x512xbf16>
    %207 = vector.shape_cast %206 : vector<1x16x512xbf16> to vector<16x512xbf16>
    %208 = arith.extf %207 : vector<16x512xbf16> to vector<16x512xf32>
    %209 = arith.truncf %204 : vector<16x128xf32> to vector<16x128xbf16>
    %cst_53 = arith.constant dense<0.000000e+00> : vector<16x512xf32>
    %210 = tpu.matmul %209, %1, %cst_53 {dimension_numbers = #tpu.dot_dimension_numbers<[1], [0], [0], [1], [0, 0, 1, 1], [], []>} : vector<16x128xbf16>, vector<128x512xbf16>, vector<16x512xf32> -> vector<16x512xf32>
    %211 = arith.addf %208, %210 : vector<16x512xf32>
    %212 = arith.truncf %211 : vector<16x512xf32> to vector<16x512xbf16>
    %213 = vector.extract_strided_slice %212 {offsets = [0, 0], sizes = [16, 128], strides = [1, 1]} : vector<16x512xbf16> to vector<16x128xbf16>
    %214 = arith.negf %213 : vector<16x128xbf16>
    %215 = math.exp %214 : vector<16x128xbf16>
    %cst_54 = arith.constant 1.000000e+00 : bf16
    %216 = vector.broadcast %cst_54 : bf16 to vector<16x128xbf16>
    %217 = arith.addf %216, %215 : vector<16x128xbf16>
    %218 = arith.divf %216, %217 : vector<16x128xbf16>
    %219 = vector.extract_strided_slice %212 {offsets = [0, 128], sizes = [16, 128], strides = [1, 1]} : vector<16x512xbf16> to vector<16x128xbf16>
    %220 = arith.negf %219 : vector<16x128xbf16>
    %221 = math.exp %220 : vector<16x128xbf16>
    %cst_55 = arith.constant 1.000000e+00 : bf16
    %222 = vector.broadcast %cst_55 : bf16 to vector<16x128xbf16>
    %223 = arith.addf %222, %221 : vector<16x128xbf16>
    %224 = arith.divf %222, %223 : vector<16x128xbf16>
    %225 = vector.extract_strided_slice %212 {offsets = [0, 256], sizes = [16, 128], strides = [1, 1]} : vector<16x512xbf16> to vector<16x128xbf16>
    %226 = math.tanh %225 : vector<16x128xbf16>
    %227 = vector.extract_strided_slice %212 {offsets = [0, 384], sizes = [16, 128], strides = [1, 1]} : vector<16x512xbf16> to vector<16x128xbf16>
    %228 = arith.negf %227 : vector<16x128xbf16>
    %229 = math.exp %228 : vector<16x128xbf16>
    %cst_56 = arith.constant 1.000000e+00 : bf16
    %230 = vector.broadcast %cst_56 : bf16 to vector<16x128xbf16>
    %231 = arith.addf %230, %229 : vector<16x128xbf16>
    %232 = arith.divf %230, %231 : vector<16x128xbf16>
    %233 = arith.extf %224 : vector<16x128xbf16> to vector<16x128xf32>
    %234 = arith.mulf %233, %201 : vector<16x128xf32>
    %235 = arith.mulf %218, %226 : vector<16x128xbf16>
    %236 = arith.extf %235 : vector<16x128xbf16> to vector<16x128xf32>
    %237 = arith.addf %234, %236 : vector<16x128xf32>
    %238 = arith.extf %232 : vector<16x128xbf16> to vector<16x128xf32>
    %239 = math.tanh %237 : vector<16x128xf32>
    %240 = arith.mulf %238, %239 : vector<16x128xf32>
    %c6_i32 = arith.constant 6 : i32
    %241 = arith.index_cast %c6_i32 : i32 to index
    %c0_57 = arith.constant 0 : index
    %c0_58 = arith.constant 0 : index
    %242 = vector.load %arg10[%241, %c0_57, %c0_58] : memref<8x16x512xbf16, #tpu.memory_space<vmem>>, vector<1x16x512xbf16>
    %243 = vector.shape_cast %242 : vector<1x16x512xbf16> to vector<16x512xbf16>
    %244 = arith.extf %243 : vector<16x512xbf16> to vector<16x512xf32>
    %245 = arith.truncf %240 : vector<16x128xf32> to vector<16x128xbf16>
    %cst_59 = arith.constant dense<0.000000e+00> : vector<16x512xf32>
    %246 = tpu.matmul %245, %1, %cst_59 {dimension_numbers = #tpu.dot_dimension_numbers<[1], [0], [0], [1], [0, 0, 1, 1], [], []>} : vector<16x128xbf16>, vector<128x512xbf16>, vector<16x512xf32> -> vector<16x512xf32>
    %247 = arith.addf %244, %246 : vector<16x512xf32>
    %248 = arith.truncf %247 : vector<16x512xf32> to vector<16x512xbf16>
    %249 = vector.extract_strided_slice %248 {offsets = [0, 0], sizes = [16, 128], strides = [1, 1]} : vector<16x512xbf16> to vector<16x128xbf16>
    %250 = arith.negf %249 : vector<16x128xbf16>
    %251 = math.exp %250 : vector<16x128xbf16>
    %cst_60 = arith.constant 1.000000e+00 : bf16
    %252 = vector.broadcast %cst_60 : bf16 to vector<16x128xbf16>
    %253 = arith.addf %252, %251 : vector<16x128xbf16>
    %254 = arith.divf %252, %253 : vector<16x128xbf16>
    %255 = vector.extract_strided_slice %248 {offsets = [0, 128], sizes = [16, 128], strides = [1, 1]} : vector<16x512xbf16> to vector<16x128xbf16>
    %256 = arith.negf %255 : vector<16x128xbf16>
    %257 = math.exp %256 : vector<16x128xbf16>
    %cst_61 = arith.constant 1.000000e+00 : bf16
    %258 = vector.broadcast %cst_61 : bf16 to vector<16x128xbf16>
    %259 = arith.addf %258, %257 : vector<16x128xbf16>
    %260 = arith.divf %258, %259 : vector<16x128xbf16>
    %261 = vector.extract_strided_slice %248 {offsets = [0, 256], sizes = [16, 128], strides = [1, 1]} : vector<16x512xbf16> to vector<16x128xbf16>
    %262 = math.tanh %261 : vector<16x128xbf16>
    %263 = vector.extract_strided_slice %248 {offsets = [0, 384], sizes = [16, 128], strides = [1, 1]} : vector<16x512xbf16> to vector<16x128xbf16>
    %264 = arith.negf %263 : vector<16x128xbf16>
    %265 = math.exp %264 : vector<16x128xbf16>
    %cst_62 = arith.constant 1.000000e+00 : bf16
    %266 = vector.broadcast %cst_62 : bf16 to vector<16x128xbf16>
    %267 = arith.addf %266, %265 : vector<16x128xbf16>
    %268 = arith.divf %266, %267 : vector<16x128xbf16>
    %269 = arith.extf %260 : vector<16x128xbf16> to vector<16x128xf32>
    %270 = arith.mulf %269, %237 : vector<16x128xf32>
    %271 = arith.mulf %254, %262 : vector<16x128xbf16>
    %272 = arith.extf %271 : vector<16x128xbf16> to vector<16x128xf32>
    %273 = arith.addf %270, %272 : vector<16x128xf32>
    %274 = arith.extf %268 : vector<16x128xbf16> to vector<16x128xf32>
    %275 = math.tanh %273 : vector<16x128xf32>
    %276 = arith.mulf %274, %275 : vector<16x128xf32>
    %c7_i32 = arith.constant 7 : i32
    %277 = arith.index_cast %c7_i32 : i32 to index
    %c0_63 = arith.constant 0 : index
    %c0_64 = arith.constant 0 : index
    %278 = vector.load %arg10[%277, %c0_63, %c0_64] : memref<8x16x512xbf16, #tpu.memory_space<vmem>>, vector<1x16x512xbf16>
    %279 = vector.shape_cast %278 : vector<1x16x512xbf16> to vector<16x512xbf16>
    %280 = arith.extf %279 : vector<16x512xbf16> to vector<16x512xf32>
    %281 = arith.truncf %276 : vector<16x128xf32> to vector<16x128xbf16>
    %cst_65 = arith.constant dense<0.000000e+00> : vector<16x512xf32>
    %282 = tpu.matmul %281, %1, %cst_65 {dimension_numbers = #tpu.dot_dimension_numbers<[1], [0], [0], [1], [0, 0, 1, 1], [], []>} : vector<16x128xbf16>, vector<128x512xbf16>, vector<16x512xf32> -> vector<16x512xf32>
    %283 = arith.addf %280, %282 : vector<16x512xf32>
    %284 = arith.truncf %283 : vector<16x512xf32> to vector<16x512xbf16>
    %285 = vector.extract_strided_slice %284 {offsets = [0, 0], sizes = [16, 128], strides = [1, 1]} : vector<16x512xbf16> to vector<16x128xbf16>
    %286 = arith.negf %285 : vector<16x128xbf16>
    %287 = math.exp %286 : vector<16x128xbf16>
    %cst_66 = arith.constant 1.000000e+00 : bf16
    %288 = vector.broadcast %cst_66 : bf16 to vector<16x128xbf16>
    %289 = arith.addf %288, %287 : vector<16x128xbf16>
    %290 = arith.divf %288, %289 : vector<16x128xbf16>
    %291 = vector.extract_strided_slice %284 {offsets = [0, 128], sizes = [16, 128], strides = [1, 1]} : vector<16x512xbf16> to vector<16x128xbf16>
    %292 = arith.negf %291 : vector<16x128xbf16>
    %293 = math.exp %292 : vector<16x128xbf16>
    %cst_67 = arith.constant 1.000000e+00 : bf16
    %294 = vector.broadcast %cst_67 : bf16 to vector<16x128xbf16>
    %295 = arith.addf %294, %293 : vector<16x128xbf16>
    %296 = arith.divf %294, %295 : vector<16x128xbf16>
    %297 = vector.extract_strided_slice %284 {offsets = [0, 256], sizes = [16, 128], strides = [1, 1]} : vector<16x512xbf16> to vector<16x128xbf16>
    %298 = math.tanh %297 : vector<16x128xbf16>
    %299 = vector.extract_strided_slice %284 {offsets = [0, 384], sizes = [16, 128], strides = [1, 1]} : vector<16x512xbf16> to vector<16x128xbf16>
    %300 = arith.negf %299 : vector<16x128xbf16>
    %301 = math.exp %300 : vector<16x128xbf16>
    %cst_68 = arith.constant 1.000000e+00 : bf16
    %302 = vector.broadcast %cst_68 : bf16 to vector<16x128xbf16>
    %303 = arith.addf %302, %301 : vector<16x128xbf16>
    %304 = arith.divf %302, %303 : vector<16x128xbf16>
    %305 = arith.extf %296 : vector<16x128xbf16> to vector<16x128xf32>
    %306 = arith.mulf %305, %273 : vector<16x128xf32>
    %307 = arith.mulf %290, %298 : vector<16x128xbf16>
    %308 = arith.extf %307 : vector<16x128xbf16> to vector<16x128xf32>
    %309 = arith.addf %306, %308 : vector<16x128xf32>
    %310 = arith.extf %304 : vector<16x128xbf16> to vector<16x128xf32>
    %311 = math.tanh %309 : vector<16x128xf32>
    %312 = arith.mulf %310, %311 : vector<16x128xf32>
    %c7_i32_69 = arith.constant 7 : i32
    %313 = arith.truncf %312 : vector<16x128xf32> to vector<16x128xbf16>
    %314 = arith.truncf %30 : vector<16x128xf32> to vector<16x128xbf16>
    %315 = tpu.concatenate %313, %314 in 1 : vector<16x128xbf16>, vector<16x128xbf16> -> vector<16x256xbf16>
    %cst_70 = arith.constant dense<0.000000e+00> : vector<16x128xf32>
    %316 = tpu.matmul %315, %2, %cst_70 {dimension_numbers = #tpu.dot_dimension_numbers<[1], [0], [0], [1], [0, 0, 1, 1], [], []>} : vector<16x256xbf16>, vector<256x128xbf16>, vector<16x128xf32> -> vector<16x128xf32>
    %317 = vector.broadcast %3 : vector<1x128xf32> to vector<16x128xf32>
    %318 = arith.addf %316, %317 : vector<16x128xf32>
    %c0_71 = arith.constant 0 : index
    %c0_72 = arith.constant 0 : index
    %319 = vector.load %arg9[%c0_71, %c0_72] : memref<16x128xf32, #tpu.memory_space<vmem>>, vector<16x128xf32>
    tpu.vector_store %arg9[%c0_71, %c0_72], %318 {strides = array<i32>} : memref<16x128xf32, #tpu.memory_space<vmem>>, vector<16x128xf32>,
    return
  }
  func.func @transform_0(%arg0: i32) -> (i32, i32, i32) {
    %c0_i32 = arith.constant 0 : i32
    %c0_i32_0 = arith.constant 0 : i32
    %c0_i32_1 = arith.constant 0 : i32
    return %c0_i32, %arg0, %c0_i32_0 : i32, i32, i32
  }
  func.func @transform_1(%arg0: i32) -> (i32, i32) {
    %c0_i32 = arith.constant 0 : i32
    %c0_i32_0 = arith.constant 0 : i32
    %c0_i32_1 = arith.constant 0 : i32
    return %c0_i32, %c0_i32_0 : i32, i32
  }
  func.func @transform_2(%arg0: i32) -> (i32, i32) {
    %c0_i32 = arith.constant 0 : i32
    %c0_i32_0 = arith.constant 0 : i32
    %c0_i32_1 = arith.constant 0 : i32
    return %c0_i32, %c0_i32_0 : i32, i32
  }
  func.func @transform_3(%arg0: i32) -> (i32, i32) {
    %c0_i32 = arith.constant 0 : i32
    %c0_i32_0 = arith.constant 0 : i32
    %c0_i32_1 = arith.constant 0 : i32
    return %c0_i32, %c0_i32_0 : i32, i32
  }
  func.func @transform_4(%arg0: i32) -> (i32, i32) {
    %c0_i32 = arith.constant 0 : i32
    %c0_i32_0 = arith.constant 0 : i32
    %c0_i32_1 = arith.constant 0 : i32
    return %c0_i32, %c0_i32_0 : i32, i32
  }
  func.func @transform_5(%arg0: i32) -> (i32, i32) {
    %c0_i32 = arith.constant 0 : i32
    %c0_i32_0 = arith.constant 0 : i32
    %c0_i32_1 = arith.constant 0 : i32
    return %c0_i32, %c0_i32_0 : i32, i32
  }
  func.func @transform_6(%arg0: i32) -> (i32, i32) {
    %c0_i32 = arith.constant 0 : i32
    %c0_i32_0 = arith.constant 0 : i32
    %c0_i32_1 = arith.constant 0 : i32
    return %c0_i32, %c0_i32_0 : i32, i32
  }
  func.func @transform_7(%arg0: i32) -> (i32, i32) {
    %c0_i32 = arith.constant 0 : i32
    %c0_i32_0 = arith.constant 0 : i32
    %c0_i32_1 = arith.constant 0 : i32
    return %c0_i32, %c0_i32_0 : i32, i32
  }
  func.func @transform_8(%arg0: i32) -> (i32, i32) {
    %c0_i32 = arith.constant 0 : i32
    %c0_i32_0 = arith.constant 0 : i32
    return %arg0, %c0_i32 : i32, i32
  }
}

</mosaic_0001>

<llo_original>
// kernel: seq_classifier_forward.1
$region0: #{seq_classifier_forward.1}
  #allocation0 [shape = 'u32[]', space=smem, size = 0x4, offset = 0x4, fixed_abs, tag = 'smem constant byte address 0x4 - core index']
  #allocation1 [shape = 'u32[144,128]{1,0:T(1,128)}', space=vmem, size = 0x12000, scoped, tag = 'internal scratch']
  #allocation2 [shape = 'bf16[8,16,512]{2,1,0:T(16,128)(2,1)}', space=vmem, size = 0x20000, scoped, tag = 'scratch operand']
  %s0 = inlined_call_operand.vmem [shape: bf16[8,16,32], index: 0, kind: input, shape index: {}]
  %s1 = inlined_call_operand.vmem [shape: bf16[32,512], index: 1, kind: input, shape index: {}]
  %s2 = inlined_call_operand.vmem [shape: bf16[128,512], index: 2, kind: input, shape index: {}]
  %s3 = inlined_call_operand.vmem [shape: f32[1,512], index: 3, kind: input, shape index: {}]
  %s4 = inlined_call_operand.vmem [shape: bf16[32,512], index: 4, kind: input, shape index: {}]
  %s5 = inlined_call_operand.vmem [shape: f32[1,512], index: 5, kind: input, shape index: {}]
  %s6 = inlined_call_operand.vmem [shape: bf16[256,128], index: 6, kind: input, shape index: {}]
  %s7 = inlined_call_operand.vmem [shape: f32[1,128], index: 7, kind: input, shape index: {}]
  %s8 = inlined_call_operand.vmem [shape: f32[16,128], index: 8, kind: output, shape index: {}]
  %s9 = sld [smem:[#allocation0]]
  $region42: #{seq_classifier_forward.1} parent=0
    _
  %s11 = ssub.s32 1, %s9
  %s12 = scalar_select 0, %s11, %s9
  // Predicated region
  $region2: #{seq_classifier_forward.1} parent=0 // pred_check
    _
  $region3: #{seq_classifier_forward.1} parent=0 // pred_check_branch
    %14 = sbr.rel (0) target = $region5
  $region4: #{seq_classifier_forward.1} parent=0 // pred_region
    _
  $region5: #{seq_classifier_forward.1} parent=0 // pred_fallthru
    _
  // Predicated region
  $region6: #{seq_classifier_forward.1} parent=0 // pred_check
    _
  $region7: #{seq_classifier_forward.1} parent=0 // pred_check_branch
    %16 = sbr.rel (0) target = $region9
  $region8: #{seq_classifier_forward.1} parent=0 // pred_region
    _
  $region9: #{seq_classifier_forward.1} parent=0 // pred_fallthru
    _
  // Predicated region
  $region10: #{seq_classifier_forward.1} parent=0 // pred_check
    _
  $region11: #{seq_classifier_forward.1} parent=0 // pred_check_branch
    %18 = sbr.rel (0) target = $region13
  $region12: #{seq_classifier_forward.1} parent=0 // pred_region
    _
  $region13: #{seq_classifier_forward.1} parent=0 // pred_fallthru
    _
  // Predicated region
  $region14: #{seq_classifier_forward.1} parent=0 // pred_check
    _
  $region15: #{seq_classifier_forward.1} parent=0 // pred_check_branch
    %20 = sbr.rel (0) target = $region17
  $region16: #{seq_classifier_forward.1} parent=0 // pred_region
    _
  $region17: #{seq_classifier_forward.1} parent=0 // pred_fallthru
    _
  // Predicated region
  $region18: #{seq_classifier_forward.1} parent=0 // pred_check
    _
  $region19: #{seq_classifier_forward.1} parent=0 // pred_check_branch
    %22 = sbr.rel (0) target = $region21
  $region20: #{seq_classifier_forward.1} parent=0 // pred_region
    _
  $region21: #{seq_classifier_forward.1} parent=0 // pred_fallthru
    _
  // Predicated region
  $region22: #{seq_classifier_forward.1} parent=0 // pred_check
    _
  $region23: #{seq_classifier_forward.1} parent=0 // pred_check_branch
    %24 = sbr.rel (0) target = $region25
  $region24: #{seq_classifier_forward.1} parent=0 // pred_region
    _
  $region25: #{seq_classifier_forward.1} parent=0 // pred_fallthru
    _
  // Predicated region
  $region26: #{seq_classifier_forward.1} parent=0 // pred_check
    _
  $region27: #{seq_classifier_forward.1} parent=0 // pred_check_branch
    %26 = sbr.rel (0) target = $region29
  $region28: #{seq_classifier_forward.1} parent=0 // pred_region
    _
  $region29: #{seq_classifier_forward.1} parent=0 // pred_fallthru
    _
  // Predicated region
  $region30: #{seq_classifier_forward.1} parent=0 // pred_check
    _
  $region31: #{seq_classifier_forward.1} parent=0 // pred_check_branch
    %28 = sbr.rel (0) target = $region33
  $region32: #{seq_classifier_forward.1} parent=0 // pred_region
    _
  $region33: #{seq_classifier_forward.1} parent=0 // pred_fallthru
    _
  %v31 = vld [vmem:[%s0] sm:$0xf]
  %v32 = vld [vmem:[%s0 + $0x4] sm:$0xf]
  %v33 = vld [vmem:[%s0 + $0x8] sm:$0xf]
  %v34 = vld [vmem:[%s0 + $0xc] sm:$0xf]
  %v35 = vld [vmem:[%s0 + $0x10] sm:$0xf]
  %v36 = vld [vmem:[%s0 + $0x14] sm:$0xf]
  %v37 = vld [vmem:[%s0 + $0x18] sm:$0xf]
  %v38 = vld [vmem:[%s0 + $0x1c] sm:$0xf]
  %v39 = vld [vmem:[%s0 + $0x20] sm:$0xf]
  %v40 = vld [vmem:[%s0 + $0x24] sm:$0xf]
  %v41 = vld [vmem:[%s0 + $0x28] sm:$0xf]
  %v42 = vld [vmem:[%s0 + $0x2c] sm:$0xf]
  %v43 = vld [vmem:[%s0 + $0x30] sm:$0xf]
  %v44 = vld [vmem:[%s0 + $0x34] sm:$0xf]
  %v45 = vld [vmem:[%s0 + $0x38] sm:$0xf]
  %v46 = vld [vmem:[%s0 + $0x3c] sm:$0xf]
  %v47 = vld [vmem:[%s2] sm:$0xff]
  %v48 = vld [vmem:[%s2 + $0x8] sm:$0xff]
  %v49 = vld [vmem:[%s2 + $0x10] sm:$0xff]
  %v50 = vld [vmem:[%s2 + $0x18] sm:$0xff]
  %v51 = vld [vmem:[%s2 + $0x20] sm:$0xff]
  %v52 = vld [vmem:[%s2 + $0x28] sm:$0xff]
  %v53 = vld [vmem:[%s2 + $0x30] sm:$0xff]
  %v54 = vld [vmem:[%s2 + $0x38] sm:$0xff]
  %v55 = vld [vmem:[%s2 + $0x40] sm:$0xff]
  %v56 = vld [vmem:[%s2 + $0x48] sm:$0xff]
  %v57 = vld [vmem:[%s2 + $0x50] sm:$0xff]
  %v58 = vld [vmem:[%s2 + $0x58] sm:$0xff]
  %v59 = vld [vmem:[%s2 + $0x60] sm:$0xff]
  %v60 = vld [vmem:[%s2 + $0x68] sm:$0xff]
  %v61 = vld [vmem:[%s2 + $0x70] sm:$0xff]
  %v62 = vld [vmem:[%s2 + $0x78] sm:$0xff]
  %v63 = vld [vmem:[%s2 + $0x80] sm:$0xff]
  %v64 = vld [vmem:[%s2 + $0x88] sm:$0xff]
  %v65 = vld [vmem:[%s2 + $0x90] sm:$0xff]
  %v66 = vld [vmem:[%s2 + $0x98] sm:$0xff]
  %v67 = vld [vmem:[%s2 + $0xa0] sm:$0xff]
  %v68 = vld [vmem:[%s2 + $0xa8] sm:$0xff]
  %v69 = vld [vmem:[%s2 + $0xb0] sm:$0xff]
  %v70 = vld [vmem:[%s2 + $0xb8] sm:$0xff]
  %v71 = vld [vmem:[%s2 + $0xc0] sm:$0xff]
  %v72 = vld [vmem:[%s2 + $0xc8] sm:$0xff]
  %v73 = vld [vmem:[%s2 + $0xd0] sm:$0xff]
  %v74 = vld [vmem:[%s2 + $0xd8] sm:$0xff]
  %v75 = vld [vmem:[%s2 + $0xe0] sm:$0xff]
  %v76 = vld [vmem:[%s2 + $0xe8] sm:$0xff]
  %v77 = vld [vmem:[%s2 + $0xf0] sm:$0xff]
  %v78 = vld [vmem:[%s2 + $0xf8] sm:$0xff]
  %v79 = vld [vmem:[%s6] sm:$0xf]
  %v80 = vld [vmem:[%s6 + $0x4] sm:$0xf]
  %v81 = vld [vmem:[%s6 + $0x8] sm:$0xf]
  %v82 = vld [vmem:[%s6 + $0xc] sm:$0xf]
  %v83 = vld [vmem:[%s6 + $0x10] sm:$0xf]
  %v84 = vld [vmem:[%s6 + $0x14] sm:$0xf]
  %v85 = vld [vmem:[%s6 + $0x18] sm:$0xf]
  %v86 = vld [vmem:[%s6 + $0x1c] sm:$0xf]
  %v87 = vld [vmem:[%s6 + $0x20] sm:$0xf]
  %v88 = vld [vmem:[%s6 + $0x24] sm:$0xf]
  %v89 = vld [vmem:[%s6 + $0x28] sm:$0xf]
  %v90 = vld [vmem:[%s6 + $0x2c] sm:$0xf]
  %v91 = vld [vmem:[%s6 + $0x30] sm:$0xf]
  %v92 = vld [vmem:[%s6 + $0x34] sm:$0xf]
  %v93 = vld [vmem:[%s6 + $0x38] sm:$0xf]
  %v94 = vld [vmem:[%s6 + $0x3c] sm:$0xf]
  %v95 = vld [vmem:[%s6 + $0x40] sm:$0xf]
  %v96 = vld [vmem:[%s6 + $0x44] sm:$0xf]
  %v97 = vld [vmem:[%s6 + $0x48] sm:$0xf]
  %v98 = vld [vmem:[%s6 + $0x4c] sm:$0xf]
  %v99 = vld [vmem:[%s6 + $0x50] sm:$0xf]
  %v100 = vld [vmem:[%s6 + $0x54] sm:$0xf]
  %v101 = vld [vmem:[%s6 + $0x58] sm:$0xf]
  %v102 = vld [vmem:[%s6 + $0x5c] sm:$0xf]
  %v103 = vld [vmem:[%s6 + $0x60] sm:$0xf]
  %v104 = vld [vmem:[%s6 + $0x64] sm:$0xf]
  %v105 = vld [vmem:[%s6 + $0x68] sm:$0xf]
  %v106 = vld [vmem:[%s6 + $0x6c] sm:$0xf]
  %v107 = vld [vmem:[%s6 + $0x70] sm:$0xf]
  %v108 = vld [vmem:[%s6 + $0x74] sm:$0xf]
  %v109 = vld [vmem:[%s6 + $0x78] sm:$0xf]
  %v110 = vld [vmem:[%s6 + $0x7c] sm:$0xf]
  %v111 = vld [vmem:[%s7] sm:$0x1]
  %v112 = vld [vmem:[%s4] sm:$0xff]
  %v113 = vld [vmem:[%s4 + $0x8] sm:$0xff]
  %v114 = vld [vmem:[%s4 + $0x10] sm:$0xff]
  %v115 = vld [vmem:[%s4 + $0x18] sm:$0xff]
  %v116 = vld [vmem:[%s4 + $0x20] sm:$0xff]
  %v117 = vld [vmem:[%s4 + $0x28] sm:$0xff]
  %v118 = vld [vmem:[%s4 + $0x30] sm:$0xff]
  %v119 = vld [vmem:[%s4 + $0x38] sm:$0xff]
  %v120 = vld [vmem:[%s5] sm:$0xf]
  %v122 = vlaneseq
  %v123 = vshrl.u32 %v122, 7
  %v124 = vsub.s32 0, %v123
  %v125 = vrot.slane %v120, %v124
  %v126 = vlaneseq
  %v127 = vshrl.u32 %v126, 7
  %v128 = vsub.s32 2, %v127
  %v129 = vrot.slane %v120, %v128
  %v130 = vlaneseq
  %v131 = vshrl.u32 %v130, 7
  %v132 = vsub.s32 3, %v131
  %v133 = vrot.slane %v120, %v132
  %v139 = vunpack.c.l.b16 %v45
  %v140 = vunpack.c.l.b16 %v46
  %v141 = vpack.c.b16 %v140, %v139
  %v150 = vunpack.c.l.b16 %v112
  %v151 = vunpack.c.h.b16 %v112
  %v152 = vunpack.c.l.b16 %v113
  %v153 = vunpack.c.h.b16 %v113
  %v154 = vunpack.c.l.b16 %v114
  %v155 = vunpack.c.h.b16 %v114
  %v156 = vunpack.c.l.b16 %v115
  %v157 = vunpack.c.h.b16 %v115
  %v158 = vunpack.c.l.b16 %v116
  %v159 = vunpack.c.h.b16 %v116
  %v160 = vunpack.c.l.b16 %v117
  %v161 = vunpack.c.h.b16 %v117
  %v162 = vunpack.c.l.b16 %v118
  %v163 = vunpack.c.h.b16 %v118
  %v164 = vunpack.c.l.b16 %v119
  %v165 = vunpack.c.h.b16 %v119
  %v166 = vpack.c.b16 %v154, %v150
  %v167 = vpack.c.b16 %v155, %v151
  %v168 = vpack.c.b16 %v156, %v152
  %v169 = vpack.c.b16 %v157, %v153
  %v170 = vpack.c.b16 %v162, %v158
  %v171 = vpack.c.b16 %v163, %v159
  %v172 = vpack.c.b16 %v164, %v160
  %v173 = vpack.c.b16 %v165, %v161
  %vm182 = vcmask 261120
  %v184 = vsel %vm182, %v141, 0
  %186 = vmatprep.subr.bf16.mxu0 %v167
  %187 = vmatpush1.bf16.msra.mxu0 %v166
  %188 = vmatprep.subr.bf16.mxu0 %v171
  %189 = vmatpush1.bf16.msra.mxu0 %v170
  %190 = vmatprep.subr.bf16.mxu0 0
  %191 = vmatpush1.bf16.msra.mxu0 0
  %192 = vmatprep.subr.bf16.mxu0 0
  %193 = vmatpush1.bf16.msra.mxu0 0
  %194 = vmatprep.subr.bf16.mxu0 0
  %195 = vmatpush1.bf16.msra.mxu0 0
  %196 = vmatprep.subr.bf16.mxu0 0
  %197 = vmatpush1.bf16.msra.mxu0 0
  %198 = vmatprep.subr.bf16.mxu0 0
  %199 = vmatpush1.bf16.msra.mxu0 0
  %200 = vmatprep.subr.bf16.mxu0 0
  %201 = vmatpush1.bf16.msra.mxu0 0
  %202 = vmatprep.subr.bf16.mxu0 0
  %203 = vmatpush1.bf16.msra.mxu0 0
  %204 = vmatprep.subr.bf16.mxu0 0
  %205 = vmatpush1.bf16.msra.mxu0 0
  %206 = vmatprep.subr.bf16.mxu0 0
  %207 = vmatpush1.bf16.msra.mxu0 0
  %208 = vmatprep.subr.bf16.mxu0 0
  %209 = vmatpush1.bf16.msra.mxu0 0
  %210 = vmatprep.subr.bf16.mxu0 0
  %211 = vmatpush1.bf16.msra.mxu0 0
  %212 = vmatprep.subr.bf16.mxu0 0
  %213 = vmatpush1.bf16.msra.mxu0 0
  %214 = vmatprep.subr.bf16.mxu0 0
  %215 = vmatpush1.bf16.msra.mxu0 0
  %216 = vmatprep.subr.bf16.mxu0 0
  %217 = vmatpush1.bf16.msra.mxu0 0
  %218 = vmatprep.mubr.bf16.mxu0 0
  %219 = vmatmul.mubr.bf16.gmra.mrb[0].mxu0 %v184
  %v220 = vpop.f32.mrb[0].mxu0
  %v221 = vadd.f32 %v125, %v220
  %v222 = vpop.f32.mrb[0].mxu0
  %v223 = vpop.f32.mrb[0].mxu0
  %v224 = vadd.f32 %v125, %v223
  %v225 = vpop.f32.mrb[0].mxu0
  %226 = vdwg.mxu0
  %227 = vmatprep.subr.bf16.mxu0 %v169
  %228 = vmatpush1.bf16.msra.mxu0 %v168
  %229 = vmatprep.subr.bf16.mxu0 %v173
  %230 = vmatpush1.bf16.msra.mxu0 %v172
  %231 = vmatprep.subr.bf16.mxu0 0
  %232 = vmatpush1.bf16.msra.mxu0 0
  %233 = vmatprep.subr.bf16.mxu0 0
  %234 = vmatpush1.bf16.msra.mxu0 0
  %235 = vmatprep.subr.bf16.mxu0 0
  %236 = vmatpush1.bf16.msra.mxu0 0
  %237 = vmatprep.subr.bf16.mxu0 0
  %238 = vmatpush1.bf16.msra.mxu0 0
  %239 = vmatprep.subr.bf16.mxu0 0
  %240 = vmatpush1.bf16.msra.mxu0 0
  %241 = vmatprep.subr.bf16.mxu0 0
  %242 = vmatpush1.bf16.msra.mxu0 0
  %243 = vmatprep.subr.bf16.mxu0 0
  %244 = vmatpush1.bf16.msra.mxu0 0
  %245 = vmatprep.subr.bf16.mxu0 0
  %246 = vmatpush1.bf16.msra.mxu0 0
  %247 = vmatprep.subr.bf16.mxu0 0
  %248 = vmatpush1.bf16.msra.mxu0 0
  %249 = vmatprep.subr.bf16.mxu0 0
  %250 = vmatpush1.bf16.msra.mxu0 0
  %251 = vmatprep.subr.bf16.mxu0 0
  %252 = vmatpush1.bf16.msra.mxu0 0
  %253 = vmatprep.subr.bf16.mxu0 0
  %254 = vmatpush1.bf16.msra.mxu0 0
  %255 = vmatprep.subr.bf16.mxu0 0
  %256 = vmatpush1.bf16.msra.mxu0 0
  %257 = vmatprep.subr.bf16.mxu0 0
  %258 = vmatpush1.bf16.msra.mxu0 0
  %259 = vmatprep.mubr.bf16.mxu0 0
  %260 = vmatmul.mubr.bf16.gmra.mrb[0].mxu0 %v184
  %v261 = vpop.f32.mrb[0].mxu0
  %v262 = vadd.f32 %v129, %v261
  %v263 = vpop.f32.mrb[0].mxu0
  %v264 = vadd.f32 %v133, %v263
  %v265 = vpop.f32.mrb[0].mxu0
  %v266 = vadd.f32 %v129, %v265
  %v267 = vpop.f32.mrb[0].mxu0
  %v268 = vadd.f32 %v133, %v267
  %269 = vdwg.mxu0
  %v270 = vpack.c.bf16 %v224, %v221
  %v271 = vpack.c.bf16 %v266, %v262
  %v272 = vpack.c.bf16 %v268, %v264
  %v273 = vxor.u32 %v270, 2147516416
  %v275 = vmul.bf16 %v273, 1069105081
  %v276 = vpow.bf16.pop %v275
  %v277 = vadd.bf16 %v276, 1065369472
  %v278 = vrcp.bf16.pop %v277
  %v279 = vmul.bf16 1065369472, %v278
  %v280 = vtanh.bf16.pop %v271
  %v281 = vxor.u32 %v272, 2147516416
  %v283 = vmul.bf16 %v281, 1069105081
  %v284 = vpow.bf16.pop %v283
  %v285 = vadd.bf16 %v284, 1065369472
  %v286 = vrcp.bf16.pop %v285
  %v287 = vmul.bf16 1065369472, %v286
  %v288 = vunpack.c.l.bf16 %v287
  %v289 = vunpack.c.h.bf16 %v287
  %v290 = vmul.bf16 %v279, %v280
  %v291 = vunpack.c.l.bf16 %v290
  %v292 = vunpack.c.h.bf16 %v290
  %v293 = vtanh.pop %v291
  %v294 = vtanh.pop %v292
  %v295 = vmul.f32 %v288, %v293
  %v296 = vmul.f32 %v289, %v294
  %v297 = vld [vmem:[%s1] sm:$0xff]
  %v298 = vld [vmem:[%s1 + $0x8] sm:$0xff]
  %v299 = vld [vmem:[%s1 + $0x10] sm:$0xff]
  %v300 = vld [vmem:[%s1 + $0x18] sm:$0xff]
  %v301 = vld [vmem:[%s1 + $0x20] sm:$0xff]
  %v302 = vld [vmem:[%s1 + $0x28] sm:$0xff]
  %v303 = vld [vmem:[%s1 + $0x30] sm:$0xff]
  %v304 = vld [vmem:[%s1 + $0x38] sm:$0xff]
  %v305 = vld [vmem:[%s3] sm:$0xf]
  %v307 = vlaneseq
  %v308 = vshrl.u32 %v307, 7
  %v309 = vsub.s32 0, %v308
  %v310 = vrot.slane %v305, %v309
  %v311 = vlaneseq
  %v312 = vshrl.u32 %v311, 7
  %v313 = vsub.s32 1, %v312
  %v314 = vrot.slane %v305, %v313
  %v315 = vlaneseq
  %v316 = vshrl.u32 %v315, 7
  %v317 = vsub.s32 2, %v316
  %v318 = vrot.slane %v305, %v317
  %v319 = vlaneseq
  %v320 = vshrl.u32 %v319, 7
  %v321 = vsub.s32 3, %v320
  %v322 = vrot.slane %v305, %v321
  %v341 = vunpack.c.l.b16 %v31
  %v342 = vunpack.c.l.b16 %v32
  %v343 = vunpack.c.l.b16 %v33
  %v344 = vunpack.c.l.b16 %v34
  %v345 = vunpack.c.l.b16 %v35
  %v346 = vunpack.c.l.b16 %v36
  %v347 = vunpack.c.l.b16 %v37
  %v348 = vunpack.c.l.b16 %v38
  %v349 = vunpack.c.l.b16 %v39
  %v350 = vunpack.c.l.b16 %v40
  %v351 = vunpack.c.l.b16 %v41
  %v352 = vunpack.c.l.b16 %v42
  %v353 = vunpack.c.l.b16 %v43
  %v354 = vunpack.c.l.b16 %v44
  %v355 = vpack.c.b16 %v342, %v341
  %v356 = vpack.c.b16 %v344, %v343
  %v357 = vpack.c.b16 %v346, %v345
  %v358 = vpack.c.b16 %v348, %v347
  %v359 = vpack.c.b16 %v350, %v349
  %v360 = vpack.c.b16 %v352, %v351
  %v361 = vpack.c.b16 %v354, %v353
  %v370 = vunpack.c.l.b16 %v297
  %v371 = vunpack.c.h.b16 %v297
  %v372 = vunpack.c.l.b16 %v298
  %v373 = vunpack.c.h.b16 %v298
  %v374 = vunpack.c.l.b16 %v299
  %v375 = vunpack.c.h.b16 %v299
  %v376 = vunpack.c.l.b16 %v300
  %v377 = vunpack.c.h.b16 %v300
  %v378 = vunpack.c.l.b16 %v301
  %v379 = vunpack.c.h.b16 %v301
  %v380 = vunpack.c.l.b16 %v302
  %v381 = vunpack.c.h.b16 %v302
  %v382 = vunpack.c.l.b16 %v303
  %v383 = vunpack.c.h.b16 %v303
  %v384 = vunpack.c.l.b16 %v304
  %v385 = vunpack.c.h.b16 %v304
  %v386 = vpack.c.b16 %v374, %v370
  %v387 = vpack.c.b16 %v375, %v371
  %v388 = vpack.c.b16 %v376, %v372
  %v389 = vpack.c.b16 %v377, %v373
  %v390 = vpack.c.b16 %v382, %v378
  %v391 = vpack.c.b16 %v383, %v379
  %v392 = vpack.c.b16 %v384, %v380
  %v393 = vpack.c.b16 %v385, %v381
  %v403 = vsel %vm182, %v355, 0
  %v406 = vsel %vm182, %v356, 0
  %v409 = vsel %vm182, %v357, 0
  %v412 = vsel %vm182, %v358, 0
  %v415 = vsel %vm182, %v359, 0
  %v418 = vsel %vm182, %v360, 0
  %v421 = vsel %vm182, %v361, 0
  %423 = vmatprep.subr.bf16.mxu0 %v387
  %424 = vmatpush1.bf16.msra.mxu0 %v386
  %425 = vmatprep.subr.bf16.mxu0 %v391
  %426 = vmatpush1.bf16.msra.mxu0 %v390
  %427 = vmatprep.subr.bf16.mxu0 0
  %428 = vmatpush1.bf16.msra.mxu0 0
  %429 = vmatprep.subr.bf16.mxu0 0
  %430 = vmatpush1.bf16.msra.mxu0 0
  %431 = vmatprep.subr.bf16.mxu0 0
  %432 = vmatpush1.bf16.msra.mxu0 0
  %433 = vmatprep.subr.bf16.mxu0 0
  %434 = vmatpush1.bf16.msra.mxu0 0
  %435 = vmatprep.subr.bf16.mxu0 0
  %436 = vmatpush1.bf16.msra.mxu0 0
  %437 = vmatprep.subr.bf16.mxu0 0
  %438 = vmatpush1.bf16.msra.mxu0 0
  %439 = vmatprep.subr.bf16.mxu0 0
  %440 = vmatpush1.bf16.msra.mxu0 0
  %441 = vmatprep.subr.bf16.mxu0 0
  %442 = vmatpush1.bf16.msra.mxu0 0
  %443 = vmatprep.subr.bf16.mxu0 0
  %444 = vmatpush1.bf16.msra.mxu0 0
  %445 = vmatprep.subr.bf16.mxu0 0
  %446 = vmatpush1.bf16.msra.mxu0 0
  %447 = vmatprep.subr.bf16.mxu0 0
  %448 = vmatpush1.bf16.msra.mxu0 0
  %449 = vmatprep.subr.bf16.mxu0 0
  %450 = vmatpush1.bf16.msra.mxu0 0
  %451 = vmatprep.subr.bf16.mxu0 0
  %452 = vmatpush1.bf16.msra.mxu0 0
  %453 = vmatprep.subr.bf16.mxu0 0
  %454 = vmatpush1.bf16.msra.mxu0 0
  %455 = vmatprep.mubr.bf16.mxu0 0
  %456 = vmatmul.mubr.bf16.gmra.mrb[0].mxu0 %v403
  %v457 = vpop.f32.mrb[0].mxu0
  %v458 = vadd.f32 %v310, %v457
  %v459 = vpop.f32.mrb[0].mxu0
  %v460 = vadd.f32 %v314, %v459
  %v461 = vpop.f32.mrb[0].mxu0
  %v462 = vadd.f32 %v310, %v461
  %v463 = vpop.f32.mrb[0].mxu0
  %v464 = vadd.f32 %v314, %v463
  %465 = vmatprep.mubr.bf16.mxu0 0
  %466 = vmatmul.mubr.bf16.gmra.mrb[0].mxu0 %v406
  %v467 = vpop.f32.mrb[0].mxu0
  %v468 = vadd.f32 %v310, %v467
  %v469 = vpop.f32.mrb[0].mxu0
  %v470 = vadd.f32 %v314, %v469
  %v471 = vpop.f32.mrb[0].mxu0
  %v472 = vadd.f32 %v310, %v471
  %v473 = vpop.f32.mrb[0].mxu0
  %v474 = vadd.f32 %v314, %v473
  %475 = vmatprep.mubr.bf16.mxu0 0
  %476 = vmatmul.mubr.bf16.gmra.mrb[0].mxu0 %v409
  %v477 = vpop.f32.mrb[0].mxu0
  %v478 = vadd.f32 %v310, %v477
  %v479 = vpop.f32.mrb[0].mxu0
  %v480 = vadd.f32 %v314, %v479
  %v481 = vpop.f32.mrb[0].mxu0
  %v482 = vadd.f32 %v310, %v481
  %v483 = vpop.f32.mrb[0].mxu0
  %v484 = vadd.f32 %v314, %v483
  %485 = vmatprep.mubr.bf16.mxu0 0
  %486 = vmatmul.mubr.bf16.gmra.mrb[0].mxu0 %v412
  %v487 = vpop.f32.mrb[0].mxu0
  %v488 = vadd.f32 %v310, %v487
  %v489 = vpop.f32.mrb[0].mxu0
  %v490 = vadd.f32 %v314, %v489
  %v491 = vpop.f32.mrb[0].mxu0
  %v492 = vadd.f32 %v310, %v491
  %v493 = vpop.f32.mrb[0].mxu0
  %v494 = vadd.f32 %v314, %v493
  %495 = vmatprep.mubr.bf16.mxu0 0
  %496 = vmatmul.mubr.bf16.gmra.mrb[0].mxu0 %v415
  %v497 = vpop.f32.mrb[0].mxu0
  %v498 = vadd.f32 %v310, %v497
  %v499 = vpop.f32.mrb[0].mxu0
  %v500 = vadd.f32 %v314, %v499
  %v501 = vpop.f32.mrb[0].mxu0
  %v502 = vadd.f32 %v310, %v501
  %v503 = vpop.f32.mrb[0].mxu0
  %v504 = vadd.f32 %v314, %v503
  %505 = vmatprep.mubr.bf16.mxu0 0
  %506 = vmatmul.mubr.bf16.gmra.mrb[0].mxu0 %v418
  %v507 = vpop.f32.mrb[0].mxu0
  %v508 = vadd.f32 %v310, %v507
  %v509 = vpop.f32.mrb[0].mxu0
  %v510 = vadd.f32 %v314, %v509
  %v511 = vpop.f32.mrb[0].mxu0
  %v512 = vadd.f32 %v310, %v511
  %v513 = vpop.f32.mrb[0].mxu0
  %v514 = vadd.f32 %v314, %v513
  %515 = vmatprep.mubr.bf16.mxu0 0
  %516 = vmatmul.mubr.bf16.gmra.mrb[0].mxu0 %v421
  %v517 = vpop.f32.mrb[0].mxu0
  %v518 = vadd.f32 %v310, %v517
  %v519 = vpop.f32.mrb[0].mxu0
  %v520 = vadd.f32 %v314, %v519
  %v521 = vpop.f32.mrb[0].mxu0
  %v522 = vadd.f32 %v310, %v521
  %v523 = vpop.f32.mrb[0].mxu0
  %v524 = vadd.f32 %v314, %v523
  %525 = vmatprep.mubr.bf16.mxu0 0
  %526 = vmatmul.mubr.bf16.gmra.mrb[0].mxu0 %v184
  %v527 = vpop.f32.mrb[0].mxu0
  %v528 = vadd.f32 %v310, %v527
  %v529 = vpop.f32.mrb[0].mxu0
  %v530 = vadd.f32 %v314, %v529
  %v531 = vpop.f32.mrb[0].mxu0
  %v532 = vadd.f32 %v310, %v531
  %v533 = vpop.f32.mrb[0].mxu0
  %v534 = vadd.f32 %v314, %v533
  %535 = vdwg.mxu0
  %536 = vmatprep.subr.bf16.mxu0 %v389
  %537 = vmatpush1.bf16.msra.mxu0 %v388
  %538 = vmatprep.subr.bf16.mxu0 %v393
  %539 = vmatpush1.bf16.msra.mxu0 %v392
  %540 = vmatprep.subr.bf16.mxu0 0
  %541 = vmatpush1.bf16.msra.mxu0 0
  %542 = vmatprep.subr.bf16.mxu0 0
  %543 = vmatpush1.bf16.msra.mxu0 0
  %544 = vmatprep.subr.bf16.mxu0 0
  %545 = vmatpush1.bf16.msra.mxu0 0
  %546 = vmatprep.subr.bf16.mxu0 0
  %547 = vmatpush1.bf16.msra.mxu0 0
  %548 = vmatprep.subr.bf16.mxu0 0
  %549 = vmatpush1.bf16.msra.mxu0 0
  %550 = vmatprep.subr.bf16.mxu0 0
  %551 = vmatpush1.bf16.msra.mxu0 0
  %552 = vmatprep.subr.bf16.mxu0 0
  %553 = vmatpush1.bf16.msra.mxu0 0
  %554 = vmatprep.subr.bf16.mxu0 0
  %555 = vmatpush1.bf16.msra.mxu0 0
  %556 = vmatprep.subr.bf16.mxu0 0
  %557 = vmatpush1.bf16.msra.mxu0 0
  %558 = vmatprep.subr.bf16.mxu0 0
  %559 = vmatpush1.bf16.msra.mxu0 0
  %560 = vmatprep.subr.bf16.mxu0 0
  %561 = vmatpush1.bf16.msra.mxu0 0
  %562 = vmatprep.subr.bf16.mxu0 0
  %563 = vmatpush1.bf16.msra.mxu0 0
  %564 = vmatprep.subr.bf16.mxu0 0
  %565 = vmatpush1.bf16.msra.mxu0 0
  %566 = vmatprep.subr.bf16.mxu0 0
  %567 = vmatpush1.bf16.msra.mxu0 0
  %568 = vmatprep.mubr.bf16.mxu0 0
  %569 = vmatmul.mubr.bf16.gmra.mrb[0].mxu0 %v403
  %v570 = vpop.f32.mrb[0].mxu0
  %v571 = vadd.f32 %v318, %v570
  %v572 = vpop.f32.mrb[0].mxu0
  %v573 = vadd.f32 %v322, %v572
  %v574 = vpop.f32.mrb[0].mxu0
  %v575 = vadd.f32 %v318, %v574
  %v576 = vpop.f32.mrb[0].mxu0
  %v577 = vadd.f32 %v322, %v576
  %578 = vmatprep.mubr.bf16.mxu0 0
  %579 = vmatmul.mubr.bf16.gmra.mrb[0].mxu0 %v406
  %v580 = vpop.f32.mrb[0].mxu0
  %v581 = vadd.f32 %v318, %v580
  %v582 = vpop.f32.mrb[0].mxu0
  %v583 = vadd.f32 %v322, %v582
  %v584 = vpop.f32.mrb[0].mxu0
  %v585 = vadd.f32 %v318, %v584
  %v586 = vpop.f32.mrb[0].mxu0
  %v587 = vadd.f32 %v322, %v586
  %588 = vmatprep.mubr.bf16.mxu0 0
  %589 = vmatmul.mubr.bf16.gmra.mrb[0].mxu0 %v409
  %v590 = vpop.f32.mrb[0].mxu0
  %v591 = vadd.f32 %v318, %v590
  %v592 = vpop.f32.mrb[0].mxu0
  %v593 = vadd.f32 %v322, %v592
  %v594 = vpop.f32.mrb[0].mxu0
  %v595 = vadd.f32 %v318, %v594
  %v596 = vpop.f32.mrb[0].mxu0
  %v597 = vadd.f32 %v322, %v596
  %598 = vmatprep.mubr.bf16.mxu0 0
  %599 = vmatmul.mubr.bf16.gmra.mrb[0].mxu0 %v412
  %v600 = vpop.f32.mrb[0].mxu0
  %v601 = vadd.f32 %v318, %v600
  %v602 = vpop.f32.mrb[0].mxu0
  %v603 = vadd.f32 %v322, %v602
  %v604 = vpop.f32.mrb[0].mxu0
  %v605 = vadd.f32 %v318, %v604
  %v606 = vpop.f32.mrb[0].mxu0
  %v607 = vadd.f32 %v322, %v606
  %608 = vmatprep.mubr.bf16.mxu0 0
  %609 = vmatmul.mubr.bf16.gmra.mrb[0].mxu0 %v415
  %v610 = vpop.f32.mrb[0].mxu0
  %v611 = vadd.f32 %v318, %v610
  %v612 = vpop.f32.mrb[0].mxu0
  %v613 = vadd.f32 %v322, %v612
  %v614 = vpop.f32.mrb[0].mxu0
  %v615 = vadd.f32 %v318, %v614
  %v616 = vpop.f32.mrb[0].mxu0
  %v617 = vadd.f32 %v322, %v616
  %618 = vmatprep.mubr.bf16.mxu0 0
  %619 = vmatmul.mubr.bf16.gmra.mrb[0].mxu0 %v418
  %v620 = vpop.f32.mrb[0].mxu0
  %v621 = vadd.f32 %v318, %v620
  %v622 = vpop.f32.mrb[0].mxu0
  %v623 = vadd.f32 %v322, %v622
  %v624 = vpop.f32.mrb[0].mxu0
  %v625 = vadd.f32 %v318, %v624
  %v626 = vpop.f32.mrb[0].mxu0
  %v627 = vadd.f32 %v322, %v626
  %628 = vmatprep.mubr.bf16.mxu0 0
  %629 = vmatmul.mubr.bf16.gmra.mrb[0].mxu0 %v421
  %v630 = vpop.f32.mrb[0].mxu0
  %v631 = vadd.f32 %v318, %v630
  %v632 = vpop.f32.mrb[0].mxu0
  %v633 = vadd.f32 %v322, %v632
  %v634 = vpop.f32.mrb[0].mxu0
  %v635 = vadd.f32 %v318, %v634
  %v636 = vpop.f32.mrb[0].mxu0
  %v637 = vadd.f32 %v322, %v636
  %638 = vmatprep.mubr.bf16.mxu0 0
  %639 = vmatmul.mubr.bf16.gmra.mrb[0].mxu0 %v184
  %v640 = vpop.f32.mrb[0].mxu0
  %v641 = vadd.f32 %v318, %v640
  %v642 = vpop.f32.mrb[0].mxu0
  %v643 = vadd.f32 %v322, %v642
  %v644 = vpop.f32.mrb[0].mxu0
  %v645 = vadd.f32 %v318, %v644
  %v646 = vpop.f32.mrb[0].mxu0
  %v647 = vadd.f32 %v322, %v646
  %648 = vdwg.mxu0
  %v649 = vpack.c.bf16 %v462, %v458
  %v650 = vpack.c.bf16 %v464, %v460
  %v651 = vpack.c.bf16 %v575, %v571
  %v652 = vpack.c.bf16 %v577, %v573
  %v653 = vpack.c.bf16 %v472, %v468
  %v654 = vpack.c.bf16 %v474, %v470
  %v655 = vpack.c.bf16 %v585, %v581
  %v656 = vpack.c.bf16 %v587, %v583
  %v657 = vpack.c.bf16 %v482, %v478
  %v658 = vpack.c.bf16 %v484, %v480
  %v659 = vpack.c.bf16 %v595, %v591
  %v660 = vpack.c.bf16 %v597, %v593
  %v661 = vpack.c.bf16 %v492, %v488
  %v662 = vpack.c.bf16 %v494, %v490
  %v663 = vpack.c.bf16 %v605, %v601
  %v664 = vpack.c.bf16 %v607, %v603
  %v665 = vpack.c.bf16 %v502, %v498
  %v666 = vpack.c.bf16 %v504, %v500
  %v667 = vpack.c.bf16 %v615, %v611
  %v668 = vpack.c.bf16 %v617, %v613
  %v669 = vpack.c.bf16 %v512, %v508
  %v670 = vpack.c.bf16 %v514, %v510
  %v671 = vpack.c.bf16 %v625, %v621
  %v672 = vpack.c.bf16 %v627, %v623
  %v673 = vpack.c.bf16 %v522, %v518
  %v674 = vpack.c.bf16 %v524, %v520
  %v675 = vpack.c.bf16 %v635, %v631
  %v676 = vpack.c.bf16 %v637, %v633
  %v677 = vpack.c.bf16 %v532, %v528
  %v678 = vpack.c.bf16 %v534, %v530
  %v679 = vpack.c.bf16 %v645, %v641
  %v680 = vpack.c.bf16 %v647, %v643
  %681 = vst [vmem:[#allocation2] sm:$0xff] %v649
  %682 = vst [vmem:[#allocation2 + $0x8] sm:$0xff] %v650
  %683 = vst [vmem:[#allocation2 + $0x10] sm:$0xff] %v651
  %684 = vst [vmem:[#allocation2 + $0x18] sm:$0xff] %v652
  %685 = vst [vmem:[#allocation2 + $0x20] sm:$0xff] %v653
  %686 = vst [vmem:[#allocation2 + $0x28] sm:$0xff] %v654
  %687 = vst [vmem:[#allocation2 + $0x30] sm:$0xff] %v655
  %688 = vst [vmem:[#allocation2 + $0x38] sm:$0xff] %v656
  %689 = vst [vmem:[#allocation2 + $0x40] sm:$0xff] %v657
  %690 = vst [vmem:[#allocation2 + $0x48] sm:$0xff] %v658
  %691 = vst [vmem:[#allocation2 + $0x50] sm:$0xff] %v659
  %692 = vst [vmem:[#allocation2 + $0x58] sm:$0xff] %v660
  %693 = vst [vmem:[#allocation2 + $0x60] sm:$0xff] %v661
  %694 = vst [vmem:[#allocation2 + $0x68] sm:$0xff] %v662
  %695 = vst [vmem:[#allocation2 + $0x70] sm:$0xff] %v663
  %696 = vst [vmem:[#allocation2 + $0x78] sm:$0xff] %v664
  %697 = vst [vmem:[#allocation2 + $0x80] sm:$0xff] %v665
  %698 = vst [vmem:[#allocation2 + $0x88] sm:$0xff] %v666
  %699 = vst [vmem:[#allocation2 + $0x90] sm:$0xff] %v667
  %700 = vst [vmem:[#allocation2 + $0x98] sm:$0xff] %v668
  %701 = vst [vmem:[#allocation2 + $0xa0] sm:$0xff] %v669
  %702 = vst [vmem:[#allocation2 + $0xa8] sm:$0xff] %v670
  %703 = vst [vmem:[#allocation2 + $0xb0] sm:$0xff] %v671
  %704 = vst [vmem:[#allocation2 + $0xb8] sm:$0xff] %v672
  %705 = vst [vmem:[#allocation2 + $0xc0] sm:$0xff] %v673
  %706 = vst [vmem:[#allocation2 + $0xc8] sm:$0xff] %v674
  %707 = vst [vmem:[#allocation2 + $0xd0] sm:$0xff] %v675
  %708 = vst [vmem:[#allocation2 + $0xd8] sm:$0xff] %v676
  %709 = vst [vmem:[#allocation2 + $0xe0] sm:$0xff] %v677
  %710 = vst [vmem:[#allocation2 + $0xe8] sm:$0xff] %v678
  %711 = vst [vmem:[#allocation2 + $0xf0] sm:$0xff] %v679
  %712 = vst [vmem:[#allocation2 + $0xf8] sm:$0xff] %v680
  %v713 = vld [vmem:[#allocation2] sm:$0xff]
  %v714 = vld [vmem:[#allocation2 + $0x10] sm:$0xff]
  %v715 = vld [vmem:[#allocation2 + $0x18] sm:$0xff]
  %v716 = vxor.u32 %v713, 2147516416
  %v718 = vmul.bf16 %v716, 1069105081
  %v719 = vpow.bf16.pop %v718
  %v720 = vadd.bf16 %v719, 1065369472
  %v721 = vrcp.bf16.pop %v720
  %v722 = vmul.bf16 1065369472, %v721
  %v723 = vtanh.bf16.pop %v714
  %v724 = vxor.u32 %v715, 2147516416
  %v726 = vmul.bf16 %v724, 1069105081
  %v727 = vpow.bf16.pop %v726
  %v728 = vadd.bf16 %v727, 1065369472
  %v729 = vrcp.bf16.pop %v728
  %v730 = vmul.bf16 1065369472, %v729
  %v731 = vmul.bf16 %v722, %v723
  %v732 = vunpack.c.l.bf16 %v731
  %v733 = vunpack.c.h.bf16 %v731
  %v734 = vunpack.c.l.bf16 %v730
  %v735 = vunpack.c.h.bf16 %v730
  %v736 = vtanh.pop %v732
  %v737 = vtanh.pop %v733
  %v738 = vmul.f32 %v734, %v736
  %v739 = vmul.f32 %v735, %v737
  %s740 = scalar_lea.vmem [#allocation2], 32
  %v741 = vld [vmem:[%s740] sm:$0xff]
  %v742 = vld [vmem:[%s740 + $0x8] sm:$0xff]
  %v743 = vld [vmem:[%s740 + $0x10] sm:$0xff]
  %v744 = vld [vmem:[%s740 + $0x18] sm:$0xff]
  %v745 = vunpack.c.l.bf16 %v741
  %v746 = vunpack.c.l.bf16 %v742
  %v747 = vunpack.c.l.bf16 %v743
  %v748 = vunpack.c.l.bf16 %v744
  %v749 = vunpack.c.h.bf16 %v741
  %v750 = vunpack.c.h.bf16 %v742
  %v751 = vunpack.c.h.bf16 %v743
  %v752 = vunpack.c.h.bf16 %v744
  %v753 = vpack.c.bf16 %v739, %v738
  %v786 = vunpack.c.l.b16 %v47
  %v787 = vunpack.c.h.b16 %v47
  %v788 = vunpack.c.l.b16 %v48
  %v789 = vunpack.c.h.b16 %v48
  %v790 = vunpack.c.l.b16 %v49
  %v791 = vunpack.c.h.b16 %v49
  %v792 = vunpack.c.l.b16 %v50
  %v793 = vunpack.c.h.b16 %v50
  %v794 = vunpack.c.l.b16 %v51
  %v795 = vunpack.c.h.b16 %v51
  %v796 = vunpack.c.l.b16 %v52
  %v797 = vunpack.c.h.b16 %v52
  %v798 = vunpack.c.l.b16 %v53
  %v799 = vunpack.c.h.b16 %v53
  %v800 = vunpack.c.l.b16 %v54
  %v801 = vunpack.c.h.b16 %v54
  %v802 = vunpack.c.l.b16 %v55
  %v803 = vunpack.c.h.b16 %v55
  %v804 = vunpack.c.l.b16 %v56
  %v805 = vunpack.c.h.b16 %v56
  %v806 = vunpack.c.l.b16 %v57
  %v807 = vunpack.c.h.b16 %v57
  %v808 = vunpack.c.l.b16 %v58
  %v809 = vunpack.c.h.b16 %v58
  %v810 = vunpack.c.l.b16 %v59
  %v811 = vunpack.c.h.b16 %v59
  %v812 = vunpack.c.l.b16 %v60
  %v813 = vunpack.c.h.b16 %v60
  %v814 = vunpack.c.l.b16 %v61
  %v815 = vunpack.c.h.b16 %v61
  %v816 = vunpack.c.l.b16 %v62
  %v817 = vunpack.c.h.b16 %v62
  %v818 = vunpack.c.l.b16 %v63
  %v819 = vunpack.c.h.b16 %v63
  %v820 = vunpack.c.l.b16 %v64
  %v821 = vunpack.c.h.b16 %v64
  %v822 = vunpack.c.l.b16 %v65
  %v823 = vunpack.c.h.b16 %v65
  %v824 = vunpack.c.l.b16 %v66
  %v825 = vunpack.c.h.b16 %v66
  %v826 = vunpack.c.l.b16 %v67
  %v827 = vunpack.c.h.b16 %v67
  %v828 = vunpack.c.l.b16 %v68
  %v829 = vunpack.c.h.b16 %v68
  %v830 = vunpack.c.l.b16 %v69
  %v831 = vunpack.c.h.b16 %v69
  %v832 = vunpack.c.l.b16 %v70
  %v833 = vunpack.c.h.b16 %v70
  %v834 = vunpack.c.l.b16 %v71
  %v835 = vunpack.c.h.b16 %v71
  %v836 = vunpack.c.l.b16 %v72
  %v837 = vunpack.c.h.b16 %v72
  %v838 = vunpack.c.l.b16 %v73
  %v839 = vunpack.c.h.b16 %v73
  %v840 = vunpack.c.l.b16 %v74
  %v841 = vunpack.c.h.b16 %v74
  %v842 = vunpack.c.l.b16 %v75
  %v843 = vunpack.c.h.b16 %v75
  %v844 = vunpack.c.l.b16 %v76
  %v845 = vunpack.c.h.b16 %v76
  %v846 = vunpack.c.l.b16 %v77
  %v847 = vunpack.c.h.b16 %v77
  %v848 = vunpack.c.l.b16 %v78
  %v849 = vunpack.c.h.b16 %v78
  %v850 = vpack.c.b16 %v790, %v786
  %v851 = vpack.c.b16 %v791, %v787
  %v852 = vpack.c.b16 %v792, %v788
  %v853 = vpack.c.b16 %v793, %v789
  %v854 = vpack.c.b16 %v798, %v794
  %v855 = vpack.c.b16 %v799, %v795
  %v856 = vpack.c.b16 %v800, %v796
  %v857 = vpack.c.b16 %v801, %v797
  %v858 = vpack.c.b16 %v806, %v802
  %v859 = vpack.c.b16 %v807, %v803
  %v860 = vpack.c.b16 %v808, %v804
  %v861 = vpack.c.b16 %v809, %v805
  %v862 = vpack.c.b16 %v814, %v810
  %v863 = vpack.c.b16 %v815, %v811
  %v864 = vpack.c.b16 %v816, %v812
  %v865 = vpack.c.b16 %v817, %v813
  %v866 = vpack.c.b16 %v822, %v818
  %v867 = vpack.c.b16 %v823, %v819
  %v868 = vpack.c.b16 %v824, %v820
  %v869 = vpack.c.b16 %v825, %v821
  %v870 = vpack.c.b16 %v830, %v826
  %v871 = vpack.c.b16 %v831, %v827
  %v872 = vpack.c.b16 %v832, %v828
  %v873 = vpack.c.b16 %v833, %v829
  %v874 = vpack.c.b16 %v838, %v834
  %v875 = vpack.c.b16 %v839, %v835
  %v876 = vpack.c.b16 %v840, %v836
  %v877 = vpack.c.b16 %v841, %v837
  %v878 = vpack.c.b16 %v846, %v842
  %v879 = vpack.c.b16 %v847, %v843
  %v880 = vpack.c.b16 %v848, %v844
  %v881 = vpack.c.b16 %v849, %v845
  %914 = vmatprep.subr.bf16.mxu0 %v851
  %915 = vmatpush1.bf16.msra.mxu0 %v850
  %916 = vmatprep.subr.bf16.mxu0 %v855
  %917 = vmatpush1.bf16.msra.mxu0 %v854
  %918 = vmatprep.subr.bf16.mxu0 %v859
  %919 = vmatpush1.bf16.msra.mxu0 %v858
  %920 = vmatprep.subr.bf16.mxu0 %v863
  %921 = vmatpush1.bf16.msra.mxu0 %v862
  %922 = vmatprep.subr.bf16.mxu0 %v867
  %923 = vmatpush1.bf16.msra.mxu0 %v866
  %924 = vmatprep.subr.bf16.mxu0 %v871
  %925 = vmatpush1.bf16.msra.mxu0 %v870
  %926 = vmatprep.subr.bf16.mxu0 %v875
  %927 = vmatpush1.bf16.msra.mxu0 %v874
  %928 = vmatprep.subr.bf16.mxu0 %v879
  %929 = vmatpush1.bf16.msra.mxu0 %v878
  %930 = vmatprep.subr.bf16.mxu0 0
  %931 = vmatpush1.bf16.msra.mxu0 0
  %932 = vmatprep.subr.bf16.mxu0 0
  %933 = vmatpush1.bf16.msra.mxu0 0
  %934 = vmatprep.subr.bf16.mxu0 0
  %935 = vmatpush1.bf16.msra.mxu0 0
  %936 = vmatprep.subr.bf16.mxu0 0
  %937 = vmatpush1.bf16.msra.mxu0 0
  %938 = vmatprep.subr.bf16.mxu0 0
  %939 = vmatpush1.bf16.msra.mxu0 0
  %940 = vmatprep.subr.bf16.mxu0 0
  %941 = vmatpush1.bf16.msra.mxu0 0
  %942 = vmatprep.subr.bf16.mxu0 0
  %943 = vmatpush1.bf16.msra.mxu0 0
  %944 = vmatprep.subr.bf16.mxu0 0
  %945 = vmatpush1.bf16.msra.mxu0 0
  %946 = vmatprep.mubr.bf16.mxu0 0
  %947 = vmatmul.mubr.bf16.gmra.mrb[0].mxu0 %v753
  %v948 = vpop.f32.mrb[0].mxu0
  %v949 = vadd.f32 0.0, %v948
  %v950 = vpop.f32.mrb[0].mxu0
  %v951 = vadd.f32 0.0, %v950
  %v952 = vpop.f32.mrb[0].mxu0
  %v953 = vadd.f32 0.0, %v952
  %v954 = vpop.f32.mrb[0].mxu0
  %v955 = vadd.f32 0.0, %v954
  %956 = vdwg.mxu0
  %957 = vmatprep.subr.bf16.mxu0 %v853
  %958 = vmatpush1.bf16.msra.mxu0 %v852
  %959 = vmatprep.subr.bf16.mxu0 %v857
  %960 = vmatpush1.bf16.msra.mxu0 %v856
  %961 = vmatprep.subr.bf16.mxu0 %v861
  %962 = vmatpush1.bf16.msra.mxu0 %v860
  %963 = vmatprep.subr.bf16.mxu0 %v865
  %964 = vmatpush1.bf16.msra.mxu0 %v864
  %965 = vmatprep.subr.bf16.mxu0 %v869
  %966 = vmatpush1.bf16.msra.mxu0 %v868
  %967 = vmatprep.subr.bf16.mxu0 %v873
  %968 = vmatpush1.bf16.msra.mxu0 %v872
  %969 = vmatprep.subr.bf16.mxu0 %v877
  %970 = vmatpush1.bf16.msra.mxu0 %v876
  %971 = vmatprep.subr.bf16.mxu0 %v881
  %972 = vmatpush1.bf16.msra.mxu0 %v880
  %973 = vmatprep.subr.bf16.mxu0 0
  %974 = vmatpush1.bf16.msra.mxu0 0
  %975 = vmatprep.subr.bf16.mxu0 0
  %976 = vmatpush1.bf16.msra.mxu0 0
  %977 = vmatprep.subr.bf16.mxu0 0
  %978 = vmatpush1.bf16.msra.mxu0 0
  %979 = vmatprep.subr.bf16.mxu0 0
  %980 = vmatpush1.bf16.msra.mxu0 0
  %981 = vmatprep.subr.bf16.mxu0 0
  %982 = vmatpush1.bf16.msra.mxu0 0
  %983 = vmatprep.subr.bf16.mxu0 0
  %984 = vmatpush1.bf16.msra.mxu0 0
  %985 = vmatprep.subr.bf16.mxu0 0
  %986 = vmatpush1.bf16.msra.mxu0 0
  %987 = vmatprep.subr.bf16.mxu0 0
  %988 = vmatpush1.bf16.msra.mxu0 0
  %989 = vmatprep.mubr.bf16.mxu0 0
  %990 = vmatmul.mubr.bf16.gmra.mrb[0].mxu0 %v753
  %v991 = vpop.f32.mrb[0].mxu0
  %v992 = vadd.f32 0.0, %v991
  %v993 = vpop.f32.mrb[0].mxu0
  %v994 = vadd.f32 0.0, %v993
  %v995 = vpop.f32.mrb[0].mxu0
  %v996 = vadd.f32 0.0, %v995
  %v997 = vpop.f32.mrb[0].mxu0
  %v998 = vadd.f32 0.0, %v997
  %999 = vdwg.mxu0
  %v1000 = vadd.f32 %v745, %v949
  %v1001 = vadd.f32 %v746, %v951
  %v1002 = vadd.f32 %v747, %v992
  %v1003 = vadd.f32 %v748, %v994
  %v1004 = vadd.f32 %v749, %v953
  %v1005 = vadd.f32 %v750, %v955
  %v1006 = vadd.f32 %v751, %v996
  %v1007 = vadd.f32 %v752, %v998
  %v1008 = vpack.c.bf16 %v1004, %v1000
  %v1009 = vpack.c.bf16 %v1005, %v1001
  %v1010 = vpack.c.bf16 %v1006, %v1002
  %v1011 = vpack.c.bf16 %v1007, %v1003
  %v1012 = vxor.u32 %v1008, 2147516416
  %v1014 = vmul.bf16 %v1012, 1069105081
  %v1015 = vpow.bf16.pop %v1014
  %v1016 = vadd.bf16 %v1015, 1065369472
  %v1017 = vrcp.bf16.pop %v1016
  %v1018 = vmul.bf16 1065369472, %v1017
  %v1019 = vxor.u32 %v1009, 2147516416
  %v1021 = vmul.bf16 %v1019, 1069105081
  %v1022 = vpow.bf16.pop %v1021
  %v1023 = vadd.bf16 %v1022, 1065369472
  %v1024 = vrcp.bf16.pop %v1023
  %v1025 = vmul.bf16 1065369472, %v1024
  %v1026 = vtanh.bf16.pop %v1010
  %v1027 = vxor.u32 %v1011, 2147516416
  %v1029 = vmul.bf16 %v1027, 1069105081
  %v1030 = vpow.bf16.pop %v1029
  %v1031 = vadd.bf16 %v1030, 1065369472
  %v1032 = vrcp.bf16.pop %v1031
  %v1033 = vmul.bf16 1065369472, %v1032
  %v1034 = vunpack.c.l.bf16 %v1025
  %v1035 = vunpack.c.h.bf16 %v1025
  %v1036 = vmul.f32 %v1034, %v732
  %v1037 = vmul.f32 %v1035, %v733
  %v1038 = vmul.bf16 %v1018, %v1026
  %v1039 = vunpack.c.l.bf16 %v1038
  %v1040 = vunpack.c.h.bf16 %v1038
  %v1041 = vadd.f32 %v1036, %v1039
  %v1042 = vadd.f32 %v1037, %v1040
  %v1043 = vunpack.c.l.bf16 %v1033
  %v1044 = vunpack.c.h.bf16 %v1033
  %v1045 = vtanh.pop %v1041
  %v1046 = vtanh.pop %v1042
  %v1047 = vmul.f32 %v1043, %v1045
  %v1048 = vmul.f32 %v1044, %v1046
  %s1049 = scalar_lea.vmem [#allocation2], 64
  %v1050 = vld [vmem:[%s1049] sm:$0xff]
  %v1051 = vld [vmem:[%s1049 + $0x8] sm:$0xff]
  %v1052 = vld [vmem:[%s1049 + $0x10] sm:$0xff]
  %v1053 = vld [vmem:[%s1049 + $0x18] sm:$0xff]
  %v1054 = vunpack.c.l.bf16 %v1050
  %v1055 = vunpack.c.l.bf16 %v1051
  %v1056 = vunpack.c.l.bf16 %v1052
  %v1057 = vunpack.c.l.bf16 %v1053
  %v1058 = vunpack.c.h.bf16 %v1050
  %v1059 = vunpack.c.h.bf16 %v1051
  %v1060 = vunpack.c.h.bf16 %v1052
  %v1061 = vunpack.c.h.bf16 %v1053
  %v1062 = vpack.c.bf16 %v1048, %v1047
  %1063 = vmatprep.subr.bf16.mxu0 %v851
  %1064 = vmatpush1.bf16.msra.mxu0 %v850
  %1065 = vmatprep.subr.bf16.mxu0 %v855
  %1066 = vmatpush1.bf16.msra.mxu0 %v854
  %1067 = vmatprep.subr.bf16.mxu0 %v859
  %1068 = vmatpush1.bf16.msra.mxu0 %v858
  %1069 = vmatprep.subr.bf16.mxu0 %v863
  %1070 = vmatpush1.bf16.msra.mxu0 %v862
  %1071 = vmatprep.subr.bf16.mxu0 %v867
  %1072 = vmatpush1.bf16.msra.mxu0 %v866
  %1073 = vmatprep.subr.bf16.mxu0 %v871
  %1074 = vmatpush1.bf16.msra.mxu0 %v870
  %1075 = vmatprep.subr.bf16.mxu0 %v875
  %1076 = vmatpush1.bf16.msra.mxu0 %v874
  %1077 = vmatprep.subr.bf16.mxu0 %v879
  %1078 = vmatpush1.bf16.msra.mxu0 %v878
  %1079 = vmatprep.subr.bf16.mxu0 0
  %1080 = vmatpush1.bf16.msra.mxu0 0
  %1081 = vmatprep.subr.bf16.mxu0 0
  %1082 = vmatpush1.bf16.msra.mxu0 0
  %1083 = vmatprep.subr.bf16.mxu0 0
  %1084 = vmatpush1.bf16.msra.mxu0 0
  %1085 = vmatprep.subr.bf16.mxu0 0
  %1086 = vmatpush1.bf16.msra.mxu0 0
  %1087 = vmatprep.subr.bf16.mxu0 0
  %1088 = vmatpush1.bf16.msra.mxu0 0
  %1089 = vmatprep.subr.bf16.mxu0 0
  %1090 = vmatpush1.bf16.msra.mxu0 0
  %1091 = vmatprep.subr.bf16.mxu0 0
  %1092 = vmatpush1.bf16.msra.mxu0 0
  %1093 = vmatprep.subr.bf16.mxu0 0
  %1094 = vmatpush1.bf16.msra.mxu0 0
  %1095 = vmatprep.mubr.bf16.mxu0 0
  %1096 = vmatmul.mubr.bf16.gmra.mrb[0].mxu0 %v1062
  %v1097 = vpop.f32.mrb[0].mxu0
  %v1098 = vadd.f32 0.0, %v1097
  %v1099 = vpop.f32.mrb[0].mxu0
  %v1100 = vadd.f32 0.0, %v1099
  %v1101 = vpop.f32.mrb[0].mxu0
  %v1102 = vadd.f32 0.0, %v1101
  %v1103 = vpop.f32.mrb[0].mxu0
  %v1104 = vadd.f32 0.0, %v1103
  %1105 = vdwg.mxu0
  %1106 = vmatprep.subr.bf16.mxu0 %v853
  %1107 = vmatpush1.bf16.msra.mxu0 %v852
  %1108 = vmatprep.subr.bf16.mxu0 %v857
  %1109 = vmatpush1.bf16.msra.mxu0 %v856
  %1110 = vmatprep.subr.bf16.mxu0 %v861
  %1111 = vmatpush1.bf16.msra.mxu0 %v860
  %1112 = vmatprep.subr.bf16.mxu0 %v865
  %1113 = vmatpush1.bf16.msra.mxu0 %v864
  %1114 = vmatprep.subr.bf16.mxu0 %v869
  %1115 = vmatpush1.bf16.msra.mxu0 %v868
  %1116 = vmatprep.subr.bf16.mxu0 %v873
  %1117 = vmatpush1.bf16.msra.mxu0 %v872
  %1118 = vmatprep.subr.bf16.mxu0 %v877
  %1119 = vmatpush1.bf16.msra.mxu0 %v876
  %1120 = vmatprep.subr.bf16.mxu0 %v881
  %1121 = vmatpush1.bf16.msra.mxu0 %v880
  %1122 = vmatprep.subr.bf16.mxu0 0
  %1123 = vmatpush1.bf16.msra.mxu0 0
  %1124 = vmatprep.subr.bf16.mxu0 0
  %1125 = vmatpush1.bf16.msra.mxu0 0
  %1126 = vmatprep.subr.bf16.mxu0 0
  %1127 = vmatpush1.bf16.msra.mxu0 0
  %1128 = vmatprep.subr.bf16.mxu0 0
  %1129 = vmatpush1.bf16.msra.mxu0 0
  %1130 = vmatprep.subr.bf16.mxu0 0
  %1131 = vmatpush1.bf16.msra.mxu0 0
  %1132 = vmatprep.subr.bf16.mxu0 0
  %1133 = vmatpush1.bf16.msra.mxu0 0
  %1134 = vmatprep.subr.bf16.mxu0 0
  %1135 = vmatpush1.bf16.msra.mxu0 0
  %1136 = vmatprep.subr.bf16.mxu0 0
  %1137 = vmatpush1.bf16.msra.mxu0 0
  %1138 = vmatprep.mubr.bf16.mxu0 0
  %1139 = vmatmul.mubr.bf16.gmra.mrb[0].mxu0 %v1062
  %v1140 = vpop.f32.mrb[0].mxu0
  %v1141 = vadd.f32 0.0, %v1140
  %v1142 = vpop.f32.mrb[0].mxu0
  %v1143 = vadd.f32 0.0, %v1142
  %v1144 = vpop.f32.mrb[0].mxu0
  %v1145 = vadd.f32 0.0, %v1144
  %v1146 = vpop.f32.mrb[0].mxu0
  %v1147 = vadd.f32 0.0, %v1146
  %1148 = vdwg.mxu0
  %v1149 = vadd.f32 %v1054, %v1098
  %v1150 = vadd.f32 %v1055, %v1100
  %v1151 = vadd.f32 %v1056, %v1141
  %v1152 = vadd.f32 %v1057, %v1143
  %v1153 = vadd.f32 %v1058, %v1102
  %v1154 = vadd.f32 %v1059, %v1104
  %v1155 = vadd.f32 %v1060, %v1145
  %v1156 = vadd.f32 %v1061, %v1147
  %v1157 = vpack.c.bf16 %v1153, %v1149
  %v1158 = vpack.c.bf16 %v1154, %v1150
  %v1159 = vpack.c.bf16 %v1155, %v1151
  %v1160 = vpack.c.bf16 %v1156, %v1152
  %v1161 = vxor.u32 %v1157, 2147516416
  %v1163 = vmul.bf16 %v1161, 1069105081
  %v1164 = vpow.bf16.pop %v1163
  %v1165 = vadd.bf16 %v1164, 1065369472
  %v1166 = vrcp.bf16.pop %v1165
  %v1167 = vmul.bf16 1065369472, %v1166
  %v1168 = vxor.u32 %v1158, 2147516416
  %v1170 = vmul.bf16 %v1168, 1069105081
  %v1171 = vpow.bf16.pop %v1170
  %v1172 = vadd.bf16 %v1171, 1065369472
  %v1173 = vrcp.bf16.pop %v1172
  %v1174 = vmul.bf16 1065369472, %v1173
  %v1175 = vtanh.bf16.pop %v1159
  %v1176 = vxor.u32 %v1160, 2147516416
  %v1178 = vmul.bf16 %v1176, 1069105081
  %v1179 = vpow.bf16.pop %v1178
  %v1180 = vadd.bf16 %v1179, 1065369472
  %v1181 = vrcp.bf16.pop %v1180
  %v1182 = vmul.bf16 1065369472, %v1181
  %v1183 = vunpack.c.l.bf16 %v1174
  %v1184 = vunpack.c.h.bf16 %v1174
  %v1185 = vmul.f32 %v1183, %v1041
  %v1186 = vmul.f32 %v1184, %v1042
  %v1187 = vmul.bf16 %v1167, %v1175
  %v1188 = vunpack.c.l.bf16 %v1187
  %v1189 = vunpack.c.h.bf16 %v1187
  %v1190 = vadd.f32 %v1185, %v1188
  %v1191 = vadd.f32 %v1186, %v1189
  %v1192 = vunpack.c.l.bf16 %v1182
  %v1193 = vunpack.c.h.bf16 %v1182
  %v1194 = vtanh.pop %v1190
  %v1195 = vtanh.pop %v1191
  %v1196 = vmul.f32 %v1192, %v1194
  %v1197 = vmul.f32 %v1193, %v1195
  %s1198 = scalar_lea.vmem [#allocation2], 96
  %v1199 = vld [vmem:[%s1198] sm:$0xff]
  %v1200 = vld [vmem:[%s1198 + $0x8] sm:$0xff]
  %v1201 = vld [vmem:[%s1198 + $0x10] sm:$0xff]
  %v1202 = vld [vmem:[%s1198 + $0x18] sm:$0xff]
  %v1203 = vunpack.c.l.bf16 %v1199
  %v1204 = vunpack.c.l.bf16 %v1200
  %v1205 = vunpack.c.l.bf16 %v1201
  %v1206 = vunpack.c.l.bf16 %v1202
  %v1207 = vunpack.c.h.bf16 %v1199
  %v1208 = vunpack.c.h.bf16 %v1200
  %v1209 = vunpack.c.h.bf16 %v1201
  %v1210 = vunpack.c.h.bf16 %v1202
  %v1211 = vpack.c.bf16 %v1197, %v1196
  %1212 = vmatprep.subr.bf16.mxu0 %v851
  %1213 = vmatpush1.bf16.msra.mxu0 %v850
  %1214 = vmatprep.subr.bf16.mxu0 %v855
  %1215 = vmatpush1.bf16.msra.mxu0 %v854
  %1216 = vmatprep.subr.bf16.mxu0 %v859
  %1217 = vmatpush1.bf16.msra.mxu0 %v858
  %1218 = vmatprep.subr.bf16.mxu0 %v863
  %1219 = vmatpush1.bf16.msra.mxu0 %v862
  %1220 = vmatprep.subr.bf16.mxu0 %v867
  %1221 = vmatpush1.bf16.msra.mxu0 %v866
  %1222 = vmatprep.subr.bf16.mxu0 %v871
  %1223 = vmatpush1.bf16.msra.mxu0 %v870
  %1224 = vmatprep.subr.bf16.mxu0 %v875
  %1225 = vmatpush1.bf16.msra.mxu0 %v874
  %1226 = vmatprep.subr.bf16.mxu0 %v879
  %1227 = vmatpush1.bf16.msra.mxu0 %v878
  %1228 = vmatprep.subr.bf16.mxu0 0
  %1229 = vmatpush1.bf16.msra.mxu0 0
  %1230 = vmatprep.subr.bf16.mxu0 0
  %1231 = vmatpush1.bf16.msra.mxu0 0
  %1232 = vmatprep.subr.bf16.mxu0 0
  %1233 = vmatpush1.bf16.msra.mxu0 0
  %1234 = vmatprep.subr.bf16.mxu0 0
  %1235 = vmatpush1.bf16.msra.mxu0 0
  %1236 = vmatprep.subr.bf16.mxu0 0
  %1237 = vmatpush1.bf16.msra.mxu0 0
  %1238 = vmatprep.subr.bf16.mxu0 0
  %1239 = vmatpush1.bf16.msra.mxu0 0
  %1240 = vmatprep.subr.bf16.mxu0 0
  %1241 = vmatpush1.bf16.msra.mxu0 0
  %1242 = vmatprep.subr.bf16.mxu0 0
  %1243 = vmatpush1.bf16.msra.mxu0 0
  %1244 = vmatprep.mubr.bf16.mxu0 0
  %1245 = vmatmul.mubr.bf16.gmra.mrb[0].mxu0 %v1211
  %v1246 = vpop.f32.mrb[0].mxu0
  %v1247 = vadd.f32 0.0, %v1246
  %v1248 = vpop.f32.mrb[0].mxu0
  %v1249 = vadd.f32 0.0, %v1248
  %v1250 = vpop.f32.mrb[0].mxu0
  %v1251 = vadd.f32 0.0, %v1250
  %v1252 = vpop.f32.mrb[0].mxu0
  %v1253 = vadd.f32 0.0, %v1252
  %1254 = vdwg.mxu0
  %1255 = vmatprep.subr.bf16.mxu0 %v853
  %1256 = vmatpush1.bf16.msra.mxu0 %v852
  %1257 = vmatprep.subr.bf16.mxu0 %v857
  %1258 = vmatpush1.bf16.msra.mxu0 %v856
  %1259 = vmatprep.subr.bf16.mxu0 %v861
  %1260 = vmatpush1.bf16.msra.mxu0 %v860
  %1261 = vmatprep.subr.bf16.mxu0 %v865
  %1262 = vmatpush1.bf16.msra.mxu0 %v864
  %1263 = vmatprep.subr.bf16.mxu0 %v869
  %1264 = vmatpush1.bf16.msra.mxu0 %v868
  %1265 = vmatprep.subr.bf16.mxu0 %v873
  %1266 = vmatpush1.bf16.msra.mxu0 %v872
  %1267 = vmatprep.subr.bf16.mxu0 %v877
  %1268 = vmatpush1.bf16.msra.mxu0 %v876
  %1269 = vmatprep.subr.bf16.mxu0 %v881
  %1270 = vmatpush1.bf16.msra.mxu0 %v880
  %1271 = vmatprep.subr.bf16.mxu0 0
  %1272 = vmatpush1.bf16.msra.mxu0 0
  %1273 = vmatprep.subr.bf16.mxu0 0
  %1274 = vmatpush1.bf16.msra.mxu0 0
  %1275 = vmatprep.subr.bf16.mxu0 0
  %1276 = vmatpush1.bf16.msra.mxu0 0
  %1277 = vmatprep.subr.bf16.mxu0 0
  %1278 = vmatpush1.bf16.msra.mxu0 0
  %1279 = vmatprep.subr.bf16.mxu0 0
  %1280 = vmatpush1.bf16.msra.mxu0 0
  %1281 = vmatprep.subr.bf16.mxu0 0
  %1282 = vmatpush1.bf16.msra.mxu0 0
  %1283 = vmatprep.subr.bf16.mxu0 0
  %1284 = vmatpush1.bf16.msra.mxu0 0
  %1285 = vmatprep.subr.bf16.mxu0 0
  %1286 = vmatpush1.bf16.msra.mxu0 0
  %1287 = vmatprep.mubr.bf16.mxu0 0
  %1288 = vmatmul.mubr.bf16.gmra.mrb[0].mxu0 %v1211
  %v1289 = vpop.f32.mrb[0].mxu0
  %v1290 = vadd.f32 0.0, %v1289
  %v1291 = vpop.f32.mrb[0].mxu0
  %v1292 = vadd.f32 0.0, %v1291
  %v1293 = vpop.f32.mrb[0].mxu0
  %v1294 = vadd.f32 0.0, %v1293
  %v1295 = vpop.f32.mrb[0].mxu0
  %v1296 = vadd.f32 0.0, %v1295
  %1297 = vdwg.mxu0
  %v1298 = vadd.f32 %v1203, %v1247
  %v1299 = vadd.f32 %v1204, %v1249
  %v1300 = vadd.f32 %v1205, %v1290
  %v1301 = vadd.f32 %v1206, %v1292
  %v1302 = vadd.f32 %v1207, %v1251
  %v1303 = vadd.f32 %v1208, %v1253
  %v1304 = vadd.f32 %v1209, %v1294
  %v1305 = vadd.f32 %v1210, %v1296
  %v1306 = vpack.c.bf16 %v1302, %v1298
  %v1307 = vpack.c.bf16 %v1303, %v1299
  %v1308 = vpack.c.bf16 %v1304, %v1300
  %v1309 = vpack.c.bf16 %v1305, %v1301
  %v1310 = vxor.u32 %v1306, 2147516416
  %v1312 = vmul.bf16 %v1310, 1069105081
  %v1313 = vpow.bf16.pop %v1312
  %v1314 = vadd.bf16 %v1313, 1065369472
  %v1315 = vrcp.bf16.pop %v1314
  %v1316 = vmul.bf16 1065369472, %v1315
  %v1317 = vxor.u32 %v1307, 2147516416
  %v1319 = vmul.bf16 %v1317, 1069105081
  %v1320 = vpow.bf16.pop %v1319
  %v1321 = vadd.bf16 %v1320, 1065369472
  %v1322 = vrcp.bf16.pop %v1321
  %v1323 = vmul.bf16 1065369472, %v1322
  %v1324 = vtanh.bf16.pop %v1308
  %v1325 = vxor.u32 %v1309, 2147516416
  %v1327 = vmul.bf16 %v1325, 1069105081
  %v1328 = vpow.bf16.pop %v1327
  %v1329 = vadd.bf16 %v1328, 1065369472
  %v1330 = vrcp.bf16.pop %v1329
  %v1331 = vmul.bf16 1065369472, %v1330
  %v1332 = vunpack.c.l.bf16 %v1323
  %v1333 = vunpack.c.h.bf16 %v1323
  %v1334 = vmul.f32 %v1332, %v1190
  %v1335 = vmul.f32 %v1333, %v1191
  %v1336 = vmul.bf16 %v1316, %v1324
  %v1337 = vunpack.c.l.bf16 %v1336
  %v1338 = vunpack.c.h.bf16 %v1336
  %v1339 = vadd.f32 %v1334, %v1337
  %v1340 = vadd.f32 %v1335, %v1338
  %v1341 = vunpack.c.l.bf16 %v1331
  %v1342 = vunpack.c.h.bf16 %v1331
  %v1343 = vtanh.pop %v1339
  %v1344 = vtanh.pop %v1340
  %v1345 = vmul.f32 %v1341, %v1343
  %v1346 = vmul.f32 %v1342, %v1344
  %s1347 = scalar_lea.vmem [#allocation2], 128
  %v1348 = vld [vmem:[%s1347] sm:$0xff]
  %v1349 = vld [vmem:[%s1347 + $0x8] sm:$0xff]
  %v1350 = vld [vmem:[%s1347 + $0x10] sm:$0xff]
  %v1351 = vld [vmem:[%s1347 + $0x18] sm:$0xff]
  %v1352 = vunpack.c.l.bf16 %v1348
  %v1353 = vunpack.c.l.bf16 %v1349
  %v1354 = vunpack.c.l.bf16 %v1350
  %v1355 = vunpack.c.l.bf16 %v1351
  %v1356 = vunpack.c.h.bf16 %v1348
  %v1357 = vunpack.c.h.bf16 %v1349
  %v1358 = vunpack.c.h.bf16 %v1350
  %v1359 = vunpack.c.h.bf16 %v1351
  %v1360 = vpack.c.bf16 %v1346, %v1345
  %1361 = vmatprep.subr.bf16.mxu0 %v851
  %1362 = vmatpush1.bf16.msra.mxu0 %v850
  %1363 = vmatprep.subr.bf16.mxu0 %v855
  %1364 = vmatpush1.bf16.msra.mxu0 %v854
  %1365 = vmatprep.subr.bf16.mxu0 %v859
  %1366 = vmatpush1.bf16.msra.mxu0 %v858
  %1367 = vmatprep.subr.bf16.mxu0 %v863
  %1368 = vmatpush1.bf16.msra.mxu0 %v862
  %1369 = vmatprep.subr.bf16.mxu0 %v867
  %1370 = vmatpush1.bf16.msra.mxu0 %v866
  %1371 = vmatprep.subr.bf16.mxu0 %v871
  %1372 = vmatpush1.bf16.msra.mxu0 %v870
  %1373 = vmatprep.subr.bf16.mxu0 %v875
  %1374 = vmatpush1.bf16.msra.mxu0 %v874
  %1375 = vmatprep.subr.bf16.mxu0 %v879
  %1376 = vmatpush1.bf16.msra.mxu0 %v878
  %1377 = vmatprep.subr.bf16.mxu0 0
  %1378 = vmatpush1.bf16.msra.mxu0 0
  %1379 = vmatprep.subr.bf16.mxu0 0
  %1380 = vmatpush1.bf16.msra.mxu0 0
  %1381 = vmatprep.subr.bf16.mxu0 0
  %1382 = vmatpush1.bf16.msra.mxu0 0
  %1383 = vmatprep.subr.bf16.mxu0 0
  %1384 = vmatpush1.bf16.msra.mxu0 0
  %1385 = vmatprep.subr.bf16.mxu0 0
  %1386 = vmatpush1.bf16.msra.mxu0 0
  %1387 = vmatprep.subr.bf16.mxu0 0
  %1388 = vmatpush1.bf16.msra.mxu0 0
  %1389 = vmatprep.subr.bf16.mxu0 0
  %1390 = vmatpush1.bf16.msra.mxu0 0
  %1391 = vmatprep.subr.bf16.mxu0 0
  %1392 = vmatpush1.bf16.msra.mxu0 0
  %1393 = vmatprep.mubr.bf16.mxu0 0
  %1394 = vmatmul.mubr.bf16.gmra.mrb[0].mxu0 %v1360
  %v1395 = vpop.f32.mrb[0].mxu0
  %v1396 = vadd.f32 0.0, %v1395
  %v1397 = vpop.f32.mrb[0].mxu0
  %v1398 = vadd.f32 0.0, %v1397
  %v1399 = vpop.f32.mrb[0].mxu0
  %v1400 = vadd.f32 0.0, %v1399
  %v1401 = vpop.f32.mrb[0].mxu0
  %v1402 = vadd.f32 0.0, %v1401
  %1403 = vdwg.mxu0
  %1404 = vmatprep.subr.bf16.mxu0 %v853
  %1405 = vmatpush1.bf16.msra.mxu0 %v852
  %1406 = vmatprep.subr.bf16.mxu0 %v857
  %1407 = vmatpush1.bf16.msra.mxu0 %v856
  %1408 = vmatprep.subr.bf16.mxu0 %v861
  %1409 = vmatpush1.bf16.msra.mxu0 %v860
  %1410 = vmatprep.subr.bf16.mxu0 %v865
  %1411 = vmatpush1.bf16.msra.mxu0 %v864
  %1412 = vmatprep.subr.bf16.mxu0 %v869
  %1413 = vmatpush1.bf16.msra.mxu0 %v868
  %1414 = vmatprep.subr.bf16.mxu0 %v873
  %1415 = vmatpush1.bf16.msra.mxu0 %v872
  %1416 = vmatprep.subr.bf16.mxu0 %v877
  %1417 = vmatpush1.bf16.msra.mxu0 %v876
  %1418 = vmatprep.subr.bf16.mxu0 %v881
  %1419 = vmatpush1.bf16.msra.mxu0 %v880
  %1420 = vmatprep.subr.bf16.mxu0 0
  %1421 = vmatpush1.bf16.msra.mxu0 0
  %1422 = vmatprep.subr.bf16.mxu0 0
  %1423 = vmatpush1.bf16.msra.mxu0 0
  %1424 = vmatprep.subr.bf16.mxu0 0
  %1425 = vmatpush1.bf16.msra.mxu0 0
  %1426 = vmatprep.subr.bf16.mxu0 0
  %1427 = vmatpush1.bf16.msra.mxu0 0
  %1428 = vmatprep.subr.bf16.mxu0 0
  %1429 = vmatpush1.bf16.msra.mxu0 0
  %1430 = vmatprep.subr.bf16.mxu0 0
  %1431 = vmatpush1.bf16.msra.mxu0 0
  %1432 = vmatprep.subr.bf16.mxu0 0
  %1433 = vmatpush1.bf16.msra.mxu0 0
  %1434 = vmatprep.subr.bf16.mxu0 0
  %1435 = vmatpush1.bf16.msra.mxu0 0
  %1436 = vmatprep.mubr.bf16.mxu0 0
  %1437 = vmatmul.mubr.bf16.gmra.mrb[0].mxu0 %v1360
  %v1438 = vpop.f32.mrb[0].mxu0
  %v1439 = vadd.f32 0.0, %v1438
  %v1440 = vpop.f32.mrb[0].mxu0
  %v1441 = vadd.f32 0.0, %v1440
  %v1442 = vpop.f32.mrb[0].mxu0
  %v1443 = vadd.f32 0.0, %v1442
  %v1444 = vpop.f32.mrb[0].mxu0
  %v1445 = vadd.f32 0.0, %v1444
  %1446 = vdwg.mxu0
  %v1447 = vadd.f32 %v1352, %v1396
  %v1448 = vadd.f32 %v1353, %v1398
  %v1449 = vadd.f32 %v1354, %v1439
  %v1450 = vadd.f32 %v1355, %v1441
  %v1451 = vadd.f32 %v1356, %v1400
  %v1452 = vadd.f32 %v1357, %v1402
  %v1453 = vadd.f32 %v1358, %v1443
  %v1454 = vadd.f32 %v1359, %v1445
  %v1455 = vpack.c.bf16 %v1451, %v1447
  %v1456 = vpack.c.bf16 %v1452, %v1448
  %v1457 = vpack.c.bf16 %v1453, %v1449
  %v1458 = vpack.c.bf16 %v1454, %v1450
  %v1459 = vxor.u32 %v1455, 2147516416
  %v1461 = vmul.bf16 %v1459, 1069105081
  %v1462 = vpow.bf16.pop %v1461
  %v1463 = vadd.bf16 %v1462, 1065369472
  %v1464 = vrcp.bf16.pop %v1463
  %v1465 = vmul.bf16 1065369472, %v1464
  %v1466 = vxor.u32 %v1456, 2147516416
  %v1468 = vmul.bf16 %v1466, 1069105081
  %v1469 = vpow.bf16.pop %v1468
  %v1470 = vadd.bf16 %v1469, 1065369472
  %v1471 = vrcp.bf16.pop %v1470
  %v1472 = vmul.bf16 1065369472, %v1471
  %v1473 = vtanh.bf16.pop %v1457
  %v1474 = vxor.u32 %v1458, 2147516416
  %v1476 = vmul.bf16 %v1474, 1069105081
  %v1477 = vpow.bf16.pop %v1476
  %v1478 = vadd.bf16 %v1477, 1065369472
  %v1479 = vrcp.bf16.pop %v1478
  %v1480 = vmul.bf16 1065369472, %v1479
  %v1481 = vunpack.c.l.bf16 %v1472
  %v1482 = vunpack.c.h.bf16 %v1472
  %v1483 = vmul.f32 %v1481, %v1339
  %v1484 = vmul.f32 %v1482, %v1340
  %v1485 = vmul.bf16 %v1465, %v1473
  %v1486 = vunpack.c.l.bf16 %v1485
  %v1487 = vunpack.c.h.bf16 %v1485
  %v1488 = vadd.f32 %v1483, %v1486
  %v1489 = vadd.f32 %v1484, %v1487
  %v1490 = vunpack.c.l.bf16 %v1480
  %v1491 = vunpack.c.h.bf16 %v1480
  %v1492 = vtanh.pop %v1488
  %v1493 = vtanh.pop %v1489
  %v1494 = vmul.f32 %v1490, %v1492
  %v1495 = vmul.f32 %v1491, %v1493
  %s1496 = scalar_lea.vmem [#allocation2], 160
  %v1497 = vld [vmem:[%s1496] sm:$0xff]
  %v1498 = vld [vmem:[%s1496 + $0x8] sm:$0xff]
  %v1499 = vld [vmem:[%s1496 + $0x10] sm:$0xff]
  %v1500 = vld [vmem:[%s1496 + $0x18] sm:$0xff]
  %v1501 = vunpack.c.l.bf16 %v1497
  %v1502 = vunpack.c.l.bf16 %v1498
  %v1503 = vunpack.c.l.bf16 %v1499
  %v1504 = vunpack.c.l.bf16 %v1500
  %v1505 = vunpack.c.h.bf16 %v1497
  %v1506 = vunpack.c.h.bf16 %v1498
  %v1507 = vunpack.c.h.bf16 %v1499
  %v1508 = vunpack.c.h.bf16 %v1500
  %v1509 = vpack.c.bf16 %v1495, %v1494
  %1510 = vmatprep.subr.bf16.mxu0 %v851
  %1511 = vmatpush1.bf16.msra.mxu0 %v850
  %1512 = vmatprep.subr.bf16.mxu0 %v855
  %1513 = vmatpush1.bf16.msra.mxu0 %v854
  %1514 = vmatprep.subr.bf16.mxu0 %v859
  %1515 = vmatpush1.bf16.msra.mxu0 %v858
  %1516 = vmatprep.subr.bf16.mxu0 %v863
  %1517 = vmatpush1.bf16.msra.mxu0 %v862
  %1518 = vmatprep.subr.bf16.mxu0 %v867
  %1519 = vmatpush1.bf16.msra.mxu0 %v866
  %1520 = vmatprep.subr.bf16.mxu0 %v871
  %1521 = vmatpush1.bf16.msra.mxu0 %v870
  %1522 = vmatprep.subr.bf16.mxu0 %v875
  %1523 = vmatpush1.bf16.msra.mxu0 %v874
  %1524 = vmatprep.subr.bf16.mxu0 %v879
  %1525 = vmatpush1.bf16.msra.mxu0 %v878
  %1526 = vmatprep.subr.bf16.mxu0 0
  %1527 = vmatpush1.bf16.msra.mxu0 0
  %1528 = vmatprep.subr.bf16.mxu0 0
  %1529 = vmatpush1.bf16.msra.mxu0 0
  %1530 = vmatprep.subr.bf16.mxu0 0
  %1531 = vmatpush1.bf16.msra.mxu0 0
  %1532 = vmatprep.subr.bf16.mxu0 0
  %1533 = vmatpush1.bf16.msra.mxu0 0
  %1534 = vmatprep.subr.bf16.mxu0 0
  %1535 = vmatpush1.bf16.msra.mxu0 0
  %1536 = vmatprep.subr.bf16.mxu0 0
  %1537 = vmatpush1.bf16.msra.mxu0 0
  %1538 = vmatprep.subr.bf16.mxu0 0
  %1539 = vmatpush1.bf16.msra.mxu0 0
  %1540 = vmatprep.subr.bf16.mxu0 0
  %1541 = vmatpush1.bf16.msra.mxu0 0
  %1542 = vmatprep.mubr.bf16.mxu0 0
  %1543 = vmatmul.mubr.bf16.gmra.mrb[0].mxu0 %v1509
  %v1544 = vpop.f32.mrb[0].mxu0
  %v1545 = vadd.f32 0.0, %v1544
  %v1546 = vpop.f32.mrb[0].mxu0
  %v1547 = vadd.f32 0.0, %v1546
  %v1548 = vpop.f32.mrb[0].mxu0
  %v1549 = vadd.f32 0.0, %v1548
  %v1550 = vpop.f32.mrb[0].mxu0
  %v1551 = vadd.f32 0.0, %v1550
  %1552 = vdwg.mxu0
  %1553 = vmatprep.subr.bf16.mxu0 %v853
  %1554 = vmatpush1.bf16.msra.mxu0 %v852
  %1555 = vmatprep.subr.bf16.mxu0 %v857
  %1556 = vmatpush1.bf16.msra.mxu0 %v856
  %1557 = vmatprep.subr.bf16.mxu0 %v861
  %1558 = vmatpush1.bf16.msra.mxu0 %v860
  %1559 = vmatprep.subr.bf16.mxu0 %v865
  %1560 = vmatpush1.bf16.msra.mxu0 %v864
  %1561 = vmatprep.subr.bf16.mxu0 %v869
  %1562 = vmatpush1.bf16.msra.mxu0 %v868
  %1563 = vmatprep.subr.bf16.mxu0 %v873
  %1564 = vmatpush1.bf16.msra.mxu0 %v872
  %1565 = vmatprep.subr.bf16.mxu0 %v877
  %1566 = vmatpush1.bf16.msra.mxu0 %v876
  %1567 = vmatprep.subr.bf16.mxu0 %v881
  %1568 = vmatpush1.bf16.msra.mxu0 %v880
  %1569 = vmatprep.subr.bf16.mxu0 0
  %1570 = vmatpush1.bf16.msra.mxu0 0
  %1571 = vmatprep.subr.bf16.mxu0 0
  %1572 = vmatpush1.bf16.msra.mxu0 0
  %1573 = vmatprep.subr.bf16.mxu0 0
  %1574 = vmatpush1.bf16.msra.mxu0 0
  %1575 = vmatprep.subr.bf16.mxu0 0
  %1576 = vmatpush1.bf16.msra.mxu0 0
  %1577 = vmatprep.subr.bf16.mxu0 0
  %1578 = vmatpush1.bf16.msra.mxu0 0
  %1579 = vmatprep.subr.bf16.mxu0 0
  %1580 = vmatpush1.bf16.msra.mxu0 0
  %1581 = vmatprep.subr.bf16.mxu0 0
  %1582 = vmatpush1.bf16.msra.mxu0 0
  %1583 = vmatprep.subr.bf16.mxu0 0
  %1584 = vmatpush1.bf16.msra.mxu0 0
  %1585 = vmatprep.mubr.bf16.mxu0 0
  %1586 = vmatmul.mubr.bf16.gmra.mrb[0].mxu0 %v1509
  %v1587 = vpop.f32.mrb[0].mxu0
  %v1588 = vadd.f32 0.0, %v1587
  %v1589 = vpop.f32.mrb[0].mxu0
  %v1590 = vadd.f32 0.0, %v1589
  %v1591 = vpop.f32.mrb[0].mxu0
  %v1592 = vadd.f32 0.0, %v1591
  %v1593 = vpop.f32.mrb[0].mxu0
  %v1594 = vadd.f32 0.0, %v1593
  %1595 = vdwg.mxu0
  %v1596 = vadd.f32 %v1501, %v1545
  %v1597 = vadd.f32 %v1502, %v1547
  %v1598 = vadd.f32 %v1503, %v1588
  %v1599 = vadd.f32 %v1504, %v1590
  %v1600 = vadd.f32 %v1505, %v1549
  %v1601 = vadd.f32 %v1506, %v1551
  %v1602 = vadd.f32 %v1507, %v1592
  %v1603 = vadd.f32 %v1508, %v1594
  %v1604 = vpack.c.bf16 %v1600, %v1596
  %v1605 = vpack.c.bf16 %v1601, %v1597
  %v1606 = vpack.c.bf16 %v1602, %v1598
  %v1607 = vpack.c.bf16 %v1603, %v1599
  %v1608 = vxor.u32 %v1604, 2147516416
  %v1610 = vmul.bf16 %v1608, 1069105081
  %v1611 = vpow.bf16.pop %v1610
  %v1612 = vadd.bf16 %v1611, 1065369472
  %v1613 = vrcp.bf16.pop %v1612
  %v1614 = vmul.bf16 1065369472, %v1613
  %v1615 = vxor.u32 %v1605, 2147516416
  %v1617 = vmul.bf16 %v1615, 1069105081
  %v1618 = vpow.bf16.pop %v1617
  %v1619 = vadd.bf16 %v1618, 1065369472
  %v1620 = vrcp.bf16.pop %v1619
  %v1621 = vmul.bf16 1065369472, %v1620
  %v1622 = vtanh.bf16.pop %v1606
  %v1623 = vxor.u32 %v1607, 2147516416
  %v1625 = vmul.bf16 %v1623, 1069105081
  %v1626 = vpow.bf16.pop %v1625
  %v1627 = vadd.bf16 %v1626, 1065369472
  %v1628 = vrcp.bf16.pop %v1627
  %v1629 = vmul.bf16 1065369472, %v1628
  %v1630 = vunpack.c.l.bf16 %v1621
  %v1631 = vunpack.c.h.bf16 %v1621
  %v1632 = vmul.f32 %v1630, %v1488
  %v1633 = vmul.f32 %v1631, %v1489
  %v1634 = vmul.bf16 %v1614, %v1622
  %v1635 = vunpack.c.l.bf16 %v1634
  %v1636 = vunpack.c.h.bf16 %v1634
  %v1637 = vadd.f32 %v1632, %v1635
  %v1638 = vadd.f32 %v1633, %v1636
  %v1639 = vunpack.c.l.bf16 %v1629
  %v1640 = vunpack.c.h.bf16 %v1629
  %v1641 = vtanh.pop %v1637
  %v1642 = vtanh.pop %v1638
  %v1643 = vmul.f32 %v1639, %v1641
  %v1644 = vmul.f32 %v1640, %v1642
  %s1645 = scalar_lea.vmem [#allocation2], 192
  %v1646 = vld [vmem:[%s1645] sm:$0xff]
  %v1647 = vld [vmem:[%s1645 + $0x8] sm:$0xff]
  %v1648 = vld [vmem:[%s1645 + $0x10] sm:$0xff]
  %v1649 = vld [vmem:[%s1645 + $0x18] sm:$0xff]
  %v1650 = vunpack.c.l.bf16 %v1646
  %v1651 = vunpack.c.l.bf16 %v1647
  %v1652 = vunpack.c.l.bf16 %v1648
  %v1653 = vunpack.c.l.bf16 %v1649
  %v1654 = vunpack.c.h.bf16 %v1646
  %v1655 = vunpack.c.h.bf16 %v1647
  %v1656 = vunpack.c.h.bf16 %v1648
  %v1657 = vunpack.c.h.bf16 %v1649
  %v1658 = vpack.c.bf16 %v1644, %v1643
  %1659 = vmatprep.subr.bf16.mxu0 %v851
  %1660 = vmatpush1.bf16.msra.mxu0 %v850
  %1661 = vmatprep.subr.bf16.mxu0 %v855
  %1662 = vmatpush1.bf16.msra.mxu0 %v854
  %1663 = vmatprep.subr.bf16.mxu0 %v859
  %1664 = vmatpush1.bf16.msra.mxu0 %v858
  %1665 = vmatprep.subr.bf16.mxu0 %v863
  %1666 = vmatpush1.bf16.msra.mxu0 %v862
  %1667 = vmatprep.subr.bf16.mxu0 %v867
  %1668 = vmatpush1.bf16.msra.mxu0 %v866
  %1669 = vmatprep.subr.bf16.mxu0 %v871
  %1670 = vmatpush1.bf16.msra.mxu0 %v870
  %1671 = vmatprep.subr.bf16.mxu0 %v875
  %1672 = vmatpush1.bf16.msra.mxu0 %v874
  %1673 = vmatprep.subr.bf16.mxu0 %v879
  %1674 = vmatpush1.bf16.msra.mxu0 %v878
  %1675 = vmatprep.subr.bf16.mxu0 0
  %1676 = vmatpush1.bf16.msra.mxu0 0
  %1677 = vmatprep.subr.bf16.mxu0 0
  %1678 = vmatpush1.bf16.msra.mxu0 0
  %1679 = vmatprep.subr.bf16.mxu0 0
  %1680 = vmatpush1.bf16.msra.mxu0 0
  %1681 = vmatprep.subr.bf16.mxu0 0
  %1682 = vmatpush1.bf16.msra.mxu0 0
  %1683 = vmatprep.subr.bf16.mxu0 0
  %1684 = vmatpush1.bf16.msra.mxu0 0
  %1685 = vmatprep.subr.bf16.mxu0 0
  %1686 = vmatpush1.bf16.msra.mxu0 0
  %1687 = vmatprep.subr.bf16.mxu0 0
  %1688 = vmatpush1.bf16.msra.mxu0 0
  %1689 = vmatprep.subr.bf16.mxu0 0
  %1690 = vmatpush1.bf16.msra.mxu0 0
  %1691 = vmatprep.mubr.bf16.mxu0 0
  %1692 = vmatmul.mubr.bf16.gmra.mrb[0].mxu0 %v1658
  %v1693 = vpop.f32.mrb[0].mxu0
  %v1694 = vadd.f32 0.0, %v1693
  %v1695 = vpop.f32.mrb[0].mxu0
  %v1696 = vadd.f32 0.0, %v1695
  %v1697 = vpop.f32.mrb[0].mxu0
  %v1698 = vadd.f32 0.0, %v1697
  %v1699 = vpop.f32.mrb[0].mxu0
  %v1700 = vadd.f32 0.0, %v1699
  %1701 = vdwg.mxu0
  %1702 = vmatprep.subr.bf16.mxu0 %v853
  %1703 = vmatpush1.bf16.msra.mxu0 %v852
  %1704 = vmatprep.subr.bf16.mxu0 %v857
  %1705 = vmatpush1.bf16.msra.mxu0 %v856
  %1706 = vmatprep.subr.bf16.mxu0 %v861
  %1707 = vmatpush1.bf16.msra.mxu0 %v860
  %1708 = vmatprep.subr.bf16.mxu0 %v865
  %1709 = vmatpush1.bf16.msra.mxu0 %v864
  %1710 = vmatprep.subr.bf16.mxu0 %v869
  %1711 = vmatpush1.bf16.msra.mxu0 %v868
  %1712 = vmatprep.subr.bf16.mxu0 %v873
  %1713 = vmatpush1.bf16.msra.mxu0 %v872
  %1714 = vmatprep.subr.bf16.mxu0 %v877
  %1715 = vmatpush1.bf16.msra.mxu0 %v876
  %1716 = vmatprep.subr.bf16.mxu0 %v881
  %1717 = vmatpush1.bf16.msra.mxu0 %v880
  %1718 = vmatprep.subr.bf16.mxu0 0
  %1719 = vmatpush1.bf16.msra.mxu0 0
  %1720 = vmatprep.subr.bf16.mxu0 0
  %1721 = vmatpush1.bf16.msra.mxu0 0
  %1722 = vmatprep.subr.bf16.mxu0 0
  %1723 = vmatpush1.bf16.msra.mxu0 0
  %1724 = vmatprep.subr.bf16.mxu0 0
  %1725 = vmatpush1.bf16.msra.mxu0 0
  %1726 = vmatprep.subr.bf16.mxu0 0
  %1727 = vmatpush1.bf16.msra.mxu0 0
  %1728 = vmatprep.subr.bf16.mxu0 0
  %1729 = vmatpush1.bf16.msra.mxu0 0
  %1730 = vmatprep.subr.bf16.mxu0 0
  %1731 = vmatpush1.bf16.msra.mxu0 0
  %1732 = vmatprep.subr.bf16.mxu0 0
  %1733 = vmatpush1.bf16.msra.mxu0 0
  %1734 = vmatprep.mubr.bf16.mxu0 0
  %1735 = vmatmul.mubr.bf16.gmra.mrb[0].mxu0 %v1658
  %v1736 = vpop.f32.mrb[0].mxu0
  %v1737 = vadd.f32 0.0, %v1736
  %v1738 = vpop.f32.mrb[0].mxu0
  %v1739 = vadd.f32 0.0, %v1738
  %v1740 = vpop.f32.mrb[0].mxu0
  %v1741 = vadd.f32 0.0, %v1740
  %v1742 = vpop.f32.mrb[0].mxu0
  %v1743 = vadd.f32 0.0, %v1742
  %1744 = vdwg.mxu0
  %v1745 = vadd.f32 %v1650, %v1694
  %v1746 = vadd.f32 %v1651, %v1696
  %v1747 = vadd.f32 %v1652, %v1737
  %v1748 = vadd.f32 %v1653, %v1739
  %v1749 = vadd.f32 %v1654, %v1698
  %v1750 = vadd.f32 %v1655, %v1700
  %v1751 = vadd.f32 %v1656, %v1741
  %v1752 = vadd.f32 %v1657, %v1743
  %v1753 = vpack.c.bf16 %v1749, %v1745
  %v1754 = vpack.c.bf16 %v1750, %v1746
  %v1755 = vpack.c.bf16 %v1751, %v1747
  %v1756 = vpack.c.bf16 %v1752, %v1748
  %v1757 = vxor.u32 %v1753, 2147516416
  %v1759 = vmul.bf16 %v1757, 1069105081
  %v1760 = vpow.bf16.pop %v1759
  %v1761 = vadd.bf16 %v1760, 1065369472
  %v1762 = vrcp.bf16.pop %v1761
  %v1763 = vmul.bf16 1065369472, %v1762
  %v1764 = vxor.u32 %v1754, 2147516416
  %v1766 = vmul.bf16 %v1764, 1069105081
  %v1767 = vpow.bf16.pop %v1766
  %v1768 = vadd.bf16 %v1767, 1065369472
  %v1769 = vrcp.bf16.pop %v1768
  %v1770 = vmul.bf16 1065369472, %v1769
  %v1771 = vtanh.bf16.pop %v1755
  %v1772 = vxor.u32 %v1756, 2147516416
  %v1774 = vmul.bf16 %v1772, 1069105081
  %v1775 = vpow.bf16.pop %v1774
  %v1776 = vadd.bf16 %v1775, 1065369472
  %v1777 = vrcp.bf16.pop %v1776
  %v1778 = vmul.bf16 1065369472, %v1777
  %v1779 = vunpack.c.l.bf16 %v1770
  %v1780 = vunpack.c.h.bf16 %v1770
  %v1781 = vmul.f32 %v1779, %v1637
  %v1782 = vmul.f32 %v1780, %v1638
  %v1783 = vmul.bf16 %v1763, %v1771
  %v1784 = vunpack.c.l.bf16 %v1783
  %v1785 = vunpack.c.h.bf16 %v1783
  %v1786 = vadd.f32 %v1781, %v1784
  %v1787 = vadd.f32 %v1782, %v1785
  %v1788 = vunpack.c.l.bf16 %v1778
  %v1789 = vunpack.c.h.bf16 %v1778
  %v1790 = vtanh.pop %v1786
  %v1791 = vtanh.pop %v1787
  %v1792 = vmul.f32 %v1788, %v1790
  %v1793 = vmul.f32 %v1789, %v1791
  %s1794 = scalar_lea.vmem [#allocation2], 224
  %v1795 = vld [vmem:[%s1794] sm:$0xff]
  %v1796 = vld [vmem:[%s1794 + $0x8] sm:$0xff]
  %v1797 = vld [vmem:[%s1794 + $0x10] sm:$0xff]
  %v1798 = vld [vmem:[%s1794 + $0x18] sm:$0xff]
  %v1799 = vunpack.c.l.bf16 %v1795
  %v1800 = vunpack.c.l.bf16 %v1796
  %v1801 = vunpack.c.l.bf16 %v1797
  %v1802 = vunpack.c.l.bf16 %v1798
  %v1803 = vunpack.c.h.bf16 %v1795
  %v1804 = vunpack.c.h.bf16 %v1796
  %v1805 = vunpack.c.h.bf16 %v1797
  %v1806 = vunpack.c.h.bf16 %v1798
  %v1807 = vpack.c.bf16 %v1793, %v1792
  %1808 = vmatprep.subr.bf16.mxu0 %v851
  %1809 = vmatpush1.bf16.msra.mxu0 %v850
  %1810 = vmatprep.subr.bf16.mxu0 %v855
  %1811 = vmatpush1.bf16.msra.mxu0 %v854
  %1812 = vmatprep.subr.bf16.mxu0 %v859
  %1813 = vmatpush1.bf16.msra.mxu0 %v858
  %1814 = vmatprep.subr.bf16.mxu0 %v863
  %1815 = vmatpush1.bf16.msra.mxu0 %v862
  %1816 = vmatprep.subr.bf16.mxu0 %v867
  %1817 = vmatpush1.bf16.msra.mxu0 %v866
  %1818 = vmatprep.subr.bf16.mxu0 %v871
  %1819 = vmatpush1.bf16.msra.mxu0 %v870
  %1820 = vmatprep.subr.bf16.mxu0 %v875
  %1821 = vmatpush1.bf16.msra.mxu0 %v874
  %1822 = vmatprep.subr.bf16.mxu0 %v879
  %1823 = vmatpush1.bf16.msra.mxu0 %v878
  %1824 = vmatprep.subr.bf16.mxu0 0
  %1825 = vmatpush1.bf16.msra.mxu0 0
  %1826 = vmatprep.subr.bf16.mxu0 0
  %1827 = vmatpush1.bf16.msra.mxu0 0
  %1828 = vmatprep.subr.bf16.mxu0 0
  %1829 = vmatpush1.bf16.msra.mxu0 0
  %1830 = vmatprep.subr.bf16.mxu0 0
  %1831 = vmatpush1.bf16.msra.mxu0 0
  %1832 = vmatprep.subr.bf16.mxu0 0
  %1833 = vmatpush1.bf16.msra.mxu0 0
  %1834 = vmatprep.subr.bf16.mxu0 0
  %1835 = vmatpush1.bf16.msra.mxu0 0
  %1836 = vmatprep.subr.bf16.mxu0 0
  %1837 = vmatpush1.bf16.msra.mxu0 0
  %1838 = vmatprep.subr.bf16.mxu0 0
  %1839 = vmatpush1.bf16.msra.mxu0 0
  %1840 = vmatprep.mubr.bf16.mxu0 0
  %1841 = vmatmul.mubr.bf16.gmra.mrb[0].mxu0 %v1807
  %v1842 = vpop.f32.mrb[0].mxu0
  %v1843 = vadd.f32 0.0, %v1842
  %v1844 = vpop.f32.mrb[0].mxu0
  %v1845 = vadd.f32 0.0, %v1844
  %v1846 = vpop.f32.mrb[0].mxu0
  %v1847 = vadd.f32 0.0, %v1846
  %v1848 = vpop.f32.mrb[0].mxu0
  %v1849 = vadd.f32 0.0, %v1848
  %1850 = vdwg.mxu0
  %1851 = vmatprep.subr.bf16.mxu0 %v853
  %1852 = vmatpush1.bf16.msra.mxu0 %v852
  %1853 = vmatprep.subr.bf16.mxu0 %v857
  %1854 = vmatpush1.bf16.msra.mxu0 %v856
  %1855 = vmatprep.subr.bf16.mxu0 %v861
  %1856 = vmatpush1.bf16.msra.mxu0 %v860
  %1857 = vmatprep.subr.bf16.mxu0 %v865
  %1858 = vmatpush1.bf16.msra.mxu0 %v864
  %1859 = vmatprep.subr.bf16.mxu0 %v869
  %1860 = vmatpush1.bf16.msra.mxu0 %v868
  %1861 = vmatprep.subr.bf16.mxu0 %v873
  %1862 = vmatpush1.bf16.msra.mxu0 %v872
  %1863 = vmatprep.subr.bf16.mxu0 %v877
  %1864 = vmatpush1.bf16.msra.mxu0 %v876
  %1865 = vmatprep.subr.bf16.mxu0 %v881
  %1866 = vmatpush1.bf16.msra.mxu0 %v880
  %1867 = vmatprep.subr.bf16.mxu0 0
  %1868 = vmatpush1.bf16.msra.mxu0 0
  %1869 = vmatprep.subr.bf16.mxu0 0
  %1870 = vmatpush1.bf16.msra.mxu0 0
  %1871 = vmatprep.subr.bf16.mxu0 0
  %1872 = vmatpush1.bf16.msra.mxu0 0
  %1873 = vmatprep.subr.bf16.mxu0 0
  %1874 = vmatpush1.bf16.msra.mxu0 0
  %1875 = vmatprep.subr.bf16.mxu0 0
  %1876 = vmatpush1.bf16.msra.mxu0 0
  %1877 = vmatprep.subr.bf16.mxu0 0
  %1878 = vmatpush1.bf16.msra.mxu0 0
  %1879 = vmatprep.subr.bf16.mxu0 0
  %1880 = vmatpush1.bf16.msra.mxu0 0
  %1881 = vmatprep.subr.bf16.mxu0 0
  %1882 = vmatpush1.bf16.msra.mxu0 0
  %1883 = vmatprep.mubr.bf16.mxu0 0
  %1884 = vmatmul.mubr.bf16.gmra.mrb[0].mxu0 %v1807
  %v1885 = vpop.f32.mrb[0].mxu0
  %v1886 = vadd.f32 0.0, %v1885
  %v1887 = vpop.f32.mrb[0].mxu0
  %v1888 = vadd.f32 0.0, %v1887
  %v1889 = vpop.f32.mrb[0].mxu0
  %v1890 = vadd.f32 0.0, %v1889
  %v1891 = vpop.f32.mrb[0].mxu0
  %v1892 = vadd.f32 0.0, %v1891
  %1893 = vdwg.mxu0
  %v1894 = vadd.f32 %v1799, %v1843
  %v1895 = vadd.f32 %v1800, %v1845
  %v1896 = vadd.f32 %v1801, %v1886
  %v1897 = vadd.f32 %v1802, %v1888
  %v1898 = vadd.f32 %v1803, %v1847
  %v1899 = vadd.f32 %v1804, %v1849
  %v1900 = vadd.f32 %v1805, %v1890
  %v1901 = vadd.f32 %v1806, %v1892
  %v1902 = vpack.c.bf16 %v1898, %v1894
  %v1903 = vpack.c.bf16 %v1899, %v1895
  %v1904 = vpack.c.bf16 %v1900, %v1896
  %v1905 = vpack.c.bf16 %v1901, %v1897
  %v1906 = vxor.u32 %v1902, 2147516416
  %v1908 = vmul.bf16 %v1906, 1069105081
  %v1909 = vpow.bf16.pop %v1908
  %v1910 = vadd.bf16 %v1909, 1065369472
  %v1911 = vrcp.bf16.pop %v1910
  %v1912 = vmul.bf16 1065369472, %v1911
  %v1913 = vxor.u32 %v1903, 2147516416
  %v1915 = vmul.bf16 %v1913, 1069105081
  %v1916 = vpow.bf16.pop %v1915
  %v1917 = vadd.bf16 %v1916, 1065369472
  %v1918 = vrcp.bf16.pop %v1917
  %v1919 = vmul.bf16 1065369472, %v1918
  %v1920 = vtanh.bf16.pop %v1904
  %v1921 = vxor.u32 %v1905, 2147516416
  %v1923 = vmul.bf16 %v1921, 1069105081
  %v1924 = vpow.bf16.pop %v1923
  %v1925 = vadd.bf16 %v1924, 1065369472
  %v1926 = vrcp.bf16.pop %v1925
  %v1927 = vmul.bf16 1065369472, %v1926
  %v1928 = vunpack.c.l.bf16 %v1919
  %v1929 = vunpack.c.h.bf16 %v1919
  %v1930 = vmul.f32 %v1928, %v1786
  %v1931 = vmul.f32 %v1929, %v1787
  %v1932 = vmul.bf16 %v1912, %v1920
  %v1933 = vunpack.c.l.bf16 %v1932
  %v1934 = vunpack.c.h.bf16 %v1932
  %v1935 = vadd.f32 %v1930, %v1933
  %v1936 = vadd.f32 %v1931, %v1934
  %v1937 = vunpack.c.l.bf16 %v1927
  %v1938 = vunpack.c.h.bf16 %v1927
  %v1939 = vtanh.pop %v1935
  %v1940 = vtanh.pop %v1936
  %v1941 = vmul.f32 %v1937, %v1939
  %v1942 = vmul.f32 %v1938, %v1940
  %v1943 = vpack.c.bf16 %v1942, %v1941
  %v1944 = vpack.c.bf16 %v296, %v295
  %v1946 = vlaneseq
  %v1947 = vshrl.u32 %v1946, 7
  %v1948 = vsub.s32 0, %v1947
  %v1949 = vrot.slane %v111, %v1948
  %v1983 = vunpack.c.l.b16 %v79
  %v1984 = vunpack.c.l.b16 %v80
  %v1985 = vunpack.c.l.b16 %v81
  %v1986 = vunpack.c.l.b16 %v82
  %v1987 = vunpack.c.l.b16 %v83
  %v1988 = vunpack.c.l.b16 %v84
  %v1989 = vunpack.c.l.b16 %v85
  %v1990 = vunpack.c.l.b16 %v86
  %v1991 = vunpack.c.l.b16 %v87
  %v1992 = vunpack.c.l.b16 %v88
  %v1993 = vunpack.c.l.b16 %v89
  %v1994 = vunpack.c.l.b16 %v90
  %v1995 = vunpack.c.l.b16 %v91
  %v1996 = vunpack.c.l.b16 %v92
  %v1997 = vunpack.c.l.b16 %v93
  %v1998 = vunpack.c.l.b16 %v94
  %v1999 = vunpack.c.l.b16 %v95
  %v2000 = vunpack.c.l.b16 %v96
  %v2001 = vunpack.c.l.b16 %v97
  %v2002 = vunpack.c.l.b16 %v98
  %v2003 = vunpack.c.l.b16 %v99
  %v2004 = vunpack.c.l.b16 %v100
  %v2005 = vunpack.c.l.b16 %v101
  %v2006 = vunpack.c.l.b16 %v102
  %v2007 = vunpack.c.l.b16 %v103
  %v2008 = vunpack.c.l.b16 %v104
  %v2009 = vunpack.c.l.b16 %v105
  %v2010 = vunpack.c.l.b16 %v106
  %v2011 = vunpack.c.l.b16 %v107
  %v2012 = vunpack.c.l.b16 %v108
  %v2013 = vunpack.c.l.b16 %v109
  %v2014 = vunpack.c.l.b16 %v110
  %v2015 = vpack.c.b16 %v1984, %v1983
  %v2016 = vpack.c.b16 %v1986, %v1985
  %v2017 = vpack.c.b16 %v1988, %v1987
  %v2018 = vpack.c.b16 %v1990, %v1989
  %v2019 = vpack.c.b16 %v1992, %v1991
  %v2020 = vpack.c.b16 %v1994, %v1993
  %v2021 = vpack.c.b16 %v1996, %v1995
  %v2022 = vpack.c.b16 %v1998, %v1997
  %v2023 = vpack.c.b16 %v2000, %v1999
  %v2024 = vpack.c.b16 %v2002, %v2001
  %v2025 = vpack.c.b16 %v2004, %v2003
  %v2026 = vpack.c.b16 %v2006, %v2005
  %v2027 = vpack.c.b16 %v2008, %v2007
  %v2028 = vpack.c.b16 %v2010, %v2009
  %v2029 = vpack.c.b16 %v2012, %v2011
  %v2030 = vpack.c.b16 %v2014, %v2013
  %2047 = vmatprep.subr.bf16.mxu0 0
  %2048 = vmatpush1.bf16.msra.mxu0 %v2015
  %2049 = vmatprep.subr.bf16.mxu0 0
  %2050 = vmatpush1.bf16.msra.mxu0 %v2016
  %2051 = vmatprep.subr.bf16.mxu0 0
  %2052 = vmatpush1.bf16.msra.mxu0 %v2017
  %2053 = vmatprep.subr.bf16.mxu0 0
  %2054 = vmatpush1.bf16.msra.mxu0 %v2018
  %2055 = vmatprep.subr.bf16.mxu0 0
  %2056 = vmatpush1.bf16.msra.mxu0 %v2019
  %2057 = vmatprep.subr.bf16.mxu0 0
  %2058 = vmatpush1.bf16.msra.mxu0 %v2020
  %2059 = vmatprep.subr.bf16.mxu0 0
  %2060 = vmatpush1.bf16.msra.mxu0 %v2021
  %2061 = vmatprep.subr.bf16.mxu0 0
  %2062 = vmatpush1.bf16.msra.mxu0 %v2022
  %2063 = vmatprep.subr.bf16.mxu0 0
  %2064 = vmatpush1.bf16.msra.mxu0 %v2023
  %2065 = vmatprep.subr.bf16.mxu0 0
  %2066 = vmatpush1.bf16.msra.mxu0 %v2024
  %2067 = vmatprep.subr.bf16.mxu0 0
  %2068 = vmatpush1.bf16.msra.mxu0 %v2025
  %2069 = vmatprep.subr.bf16.mxu0 0
  %2070 = vmatpush1.bf16.msra.mxu0 %v2026
  %2071 = vmatprep.subr.bf16.mxu0 0
  %2072 = vmatpush1.bf16.msra.mxu0 %v2027
  %2073 = vmatprep.subr.bf16.mxu0 0
  %2074 = vmatpush1.bf16.msra.mxu0 %v2028
  %2075 = vmatprep.subr.bf16.mxu0 0
  %2076 = vmatpush1.bf16.msra.mxu0 %v2029
  %2077 = vmatprep.subr.bf16.mxu0 0
  %2078 = vmatpush1.bf16.msra.mxu0 %v2030
  %2079 = vmatprep.mubr.bf16.mxu0 %v1944
  %2080 = vmatmul.mubr.bf16.gmra.mrb[0].mxu0 %v1943
  %v2081 = vpop.f32.mrb[0].mxu0
  %v2082 = vadd.f32 %v1949, %v2081
  %v2083 = vpop.f32.mrb[0].mxu0
  %v2084 = vpop.f32.mrb[0].mxu0
  %v2085 = vadd.f32 %v1949, %v2084
  %v2086 = vpop.f32.mrb[0].mxu0
  %2087 = vdwg.mxu0
  %2088 = vst [vmem:[%s8] sm:$0xff] %v2082
  %2089 = vst [vmem:[%s8 + $0x8] sm:$0xff] %v2085
  // Predicated region
  $region34: #{seq_classifier_forward.1} parent=0 // pred_check
    _
  $region35: #{seq_classifier_forward.1} parent=0 // pred_check_branch
    %2091 = sbr.rel (0) target = $region37
  $region36: #{seq_classifier_forward.1} parent=0 // pred_region
    _
  $region37: #{seq_classifier_forward.1} parent=0 // pred_fallthru
    _
  // Predicated region
  $region38: #{seq_classifier_forward.1} parent=0 // pred_check
    _
  $region39: #{seq_classifier_forward.1} parent=0 // pred_check_branch
    %2093 = sbr.rel (0) target = $region41
  $region40: #{seq_classifier_forward.1} parent=0 // pred_region
    _
  $region41: #{seq_classifier_forward.1} parent=0 // pred_fallthru
    _

</llo_original>
